<compile_context>
chip_gen: v6e
topology: v6e:2x2x1
jax: 0.10.0
libtpu: 0.0.40
codegen_flags: <defaults>
</compile_context>

<pallas_src>
import jax
import jax.numpy as jnp
from jax.experimental import pallas as pl
from jax.experimental.pallas import tpu as pltpu

EPS = 1e-5  # BatchNorm eps


def _round_up(n, m):
    return ((n + m - 1) // m) * m


# ----------------------------------------------------------------------------
# Kernel 1: key/value projections x @ W_k, x @ W_v -> two lane-aligned bf16
# outputs. Purely HBM-bound; uses a large tile independent of the attention
# tile. (The query projection is fused into the attention kernel.)
# ----------------------------------------------------------------------------
def kv_kernel(x_ref, wk_ref, wv_ref, k_ref, v_ref):
    x = x_ref[...]
    k_ref[...] = jnp.dot(x, wk_ref[...],
                         preferred_element_type=jnp.float32).astype(k_ref.dtype)
    v_ref[...] = jnp.dot(x, wv_ref[...],
                         preferred_element_type=jnp.float32).astype(v_ref.dtype)


def to_kv_pallas(x_bf, w_k, w_v, tile_n):
    n_pad, C = x_bf.shape
    out_sds = jax.ShapeDtypeStruct((n_pad, C), jnp.bfloat16)
    return pl.pallas_call(
        kv_kernel,
        grid=(n_pad // tile_n,),
        out_shape=(out_sds, out_sds),
        in_specs=[
            pl.BlockSpec((tile_n, C), lambda i: (i, 0)),
            pl.BlockSpec((C, C), lambda i: (0, 0)),
            pl.BlockSpec((C, C), lambda i: (0, 0)),
        ],
        out_specs=(
            pl.BlockSpec((tile_n, C), lambda i: (i, 0)),
            pl.BlockSpec((tile_n, C), lambda i: (i, 0)),
        ),
        compiler_params=pltpu.CompilerParams(dimension_semantics=("parallel",)),
    )(x_bf, w_k, w_v)


# ----------------------------------------------------------------------------
# Kernel 2: per-point-tile attention body.
#   x_q = x @ W_q (fused), linear_p MLP on relative positions,
#   w = x_k - x_q + p_r, linear_w MLP, softmax over neighbors,
#   out = sum_s (x_v + p_r) * w.
# BN(eval) scales are pre-folded into wp1 / ww1; remaining small vectors come
# packed in vec_ref rows: [wp1_x, wp1_y, wp1_z, bias_p1, bp2, bnw1_s, bnw1_b,
# bias_w1, bw2].
# ----------------------------------------------------------------------------
def pt_layer_kernel(x_ref, xk_ref, xv_ref, pr_ref,
                    wq_ref, wp2_ref, ww1_ref, ww2_ref, vec_ref,
                    out_ref):
    TN, K, C = xk_ref.shape
    NK = TN * K
    Hp = wp2_ref.shape[0]

    vec = vec_ref[...]                       # (9, 128) f32
    wp1_x = vec[0:1, :Hp]
    wp1_y = vec[1:2, :Hp]
    wp1_z = vec[2:3, :Hp]
    bias_p1 = vec[3:4, :Hp]
    bp2 = vec[4:5, :C]
    bnw1_s = vec[5:6, :C]
    bnw1_b = vec[6:7, :C]
    bias_w1 = vec[7:8, :2 * C]
    bw2 = vec[8:9, :C]

    # ---- fused query projection (KEEP FUSED: unfusing would turn the gather
    # into a 3C-wide one and add 50% to the dominant gathered HBM traffic).
    x_q = jnp.dot(x_ref[...], wq_ref[...],
                  preferred_element_type=jnp.float32)          # (TN, C) f32

    # ---- linear_p: Linear(3->Hp, BN folded) -> ReLU -> Linear(Hp->C)
    # contraction dim is 3: three VPU FMAs keep positions in f32.
    # (MXU alternative (NK,3)@(3,Hp) would free VALU slots; re-benchmark on
    # v6e/v7x with a bundle dump before switching.)
    pr2 = pr_ref[...]                                          # (NK, 3) f32
    h = (pr2[:, 0:1] * wp1_x + pr2[:, 1:2] * wp1_y + pr2[:, 2:3] * wp1_z
         + bias_p1)                                            # (NK, Hp)
    h = jnp.maximum(h, 0.0)
    pr_feat = jnp.dot(h.astype(jnp.bfloat16), wp2_ref[...],
                      preferred_element_type=jnp.float32) + bp2  # (NK, C) f32

    # ---- w = x_k - x_q + p_r ; bf16 x_k promotes inside the subtract
    # (no separately materialized f32 upcast of the gathered block).
    w = (xk_ref[...] - x_q[:, None, :]).reshape(NK, C) + pr_feat

    # ---- linear_w: BN(eval) -> ReLU -> Linear(C->2C, BN folded) -> ReLU
    #      -> Linear(2C->C), all in the canonical (NK, C) 2-D layout.
    w = jnp.maximum(w * bnw1_s + bnw1_b, 0.0)
    w = jnp.dot(w.astype(jnp.bfloat16), ww1_ref[...],
                preferred_element_type=jnp.float32) + bias_w1  # (NK, 2C)
    w = jnp.maximum(w, 0.0)
    w = jnp.dot(w.astype(jnp.bfloat16), ww2_ref[...],
                preferred_element_type=jnp.float32) + bw2      # (NK, C)

    # ---- softmax over the neighbor axis (PyTorch dim=1); reciprocal on EUP.
    # Single reshape back to 3-D (K=16 is a sublane multiple: layout preserving)
    w3 = w.reshape(TN, K, C)
    w_max = jnp.max(w3, axis=1, keepdims=True)
    w_exp = jnp.exp(w3 - w_max)
    w_sum = jnp.sum(w_exp, axis=1, keepdims=True)
    attn = w_exp * pl.reciprocal(w_sum, approx=True)

    # ---- einsum('n s c, n s c -> n c', x_v + p_r, w); bf16 x_v promotes here.
    v_pre = xv_ref[...] + pr_feat.reshape(TN, K, C)
    out_ref[...] = jnp.sum(v_pre * attn, axis=1)


def pt_layer_pallas(x_bf, xk_g, xv_g, pr_flat, kparams, tile_n):
    n_pad, K, C = xk_g.shape
    Hp = kparams["wp2"].shape[0]
    const2d = lambda shape: pl.BlockSpec(shape, lambda i: (0, 0))

    return pl.pallas_call(
        pt_layer_kernel,
        grid=(n_pad // tile_n,),
        out_shape=jax.ShapeDtypeStruct((n_pad, C), jnp.float32),
        in_specs=[
            pl.BlockSpec((tile_n, C), lambda i: (i, 0)),            # x (bf16)
            pl.BlockSpec((tile_n, K, C), lambda i: (i, 0, 0)),      # gathered x_k bf16
            pl.BlockSpec((tile_n, K, C), lambda i: (i, 0, 0)),      # gathered x_v bf16
            pl.BlockSpec((tile_n * K, 3), lambda i: (i, 0)),        # rel. positions f32
            const2d((C, C)),       # w_q  (bf16)
            const2d((Hp, C)),      # wp2  (bf16)
            const2d((C, 2 * C)),   # ww1  (bf16, BN folded)
            const2d((2 * C, C)),   # ww2  (bf16)
            const2d((9, 128)),     # packed f32 small vectors
        ],
        out_specs=pl.BlockSpec((tile_n, C), lambda i: (i, 0)),
        compiler_params=pltpu.CompilerParams(
            dimension_semantics=("parallel",),
            vmem_limit_bytes=64 * 1024 * 1024,
        ),
    )(x_bf, xk_g, xv_g, pr_flat,
      kparams["w_q"], kparams["wp2"], kparams["ww1"], kparams["ww2"],
      kparams["vec"])


# ----------------------------------------------------------------------------
# Glue: KNN grouping (queryandgroup equivalent, single batch) + driver.
# ----------------------------------------------------------------------------
def knn_idx(p, K):
    # TODO(synk): multi-batch offsets `o` (per-batch KNN) not handled; single batch.
    d2 = jnp.sum((p[:, None, :] - p[None, :, :]) ** 2, axis=-1)   # (N, N)
    return jnp.argsort(d2, axis=-1)[:, :K]                        # (N, K)


def prepare_kernel_params(params, C, Hp):
    """Fold eval-mode BN scales into adjacent Linear weights, cast MXU weights
    to bf16, and pack the remaining small per-channel vectors into one array."""
    assert Hp <= 128 and 2 * C <= 128, "packed-constant layout assumes Hp, 2C <= 128"

    bnp_s = params["bnp_s"].reshape(1, -1)
    wp1_f = params["wp1"] * bnp_s                  # fold BN scale into Linear(3,Hp)
    ww1_f = params["ww1"] * params["bnw2_s"]       # fold BN scale into Linear(C,2C)

    vec = jnp.zeros((9, 128), jnp.float32)
    vec = vec.at[0:3, :Hp].set(wp1_f)
    vec = vec.at[3, :Hp].set(params["bnp_b"].reshape(-1))
    vec = vec.at[4, :C].set(params["bp2"].reshape(-1))
    vec = vec.at[5, :C].set(params["bnw1_s"].reshape(-1))
    vec = vec.at[6, :C].set(params["bnw1_b"].reshape(-1))
    vec = vec.at[7, :2 * C].set(params["bnw2_b"].reshape(-1))
    vec = vec.at[8, :C].set(params["bw2"].reshape(-1))

    w_qkv = params["w_qkv"]
    return dict(
        w_q=w_qkv[:, :C].astype(jnp.bfloat16),
        w_k=w_qkv[:, C:2 * C].astype(jnp.bfloat16),
        w_v=w_qkv[:, 2 * C:].astype(jnp.bfloat16),
        wp2=params["wp2"].astype(jnp.bfloat16),
        ww1=ww1_f.astype(jnp.bfloat16),
        ww2=params["ww2"].astype(jnp.bfloat16),
        vec=vec,
    )


def point_transformer_forward(p, x, o, params, nsample=16, tile_n=512,
                              tile_n_kv=2048):
    # TODO(synk): multi-batch offsets `o` ignored (single batch, o == [N]).
    del o
    N, C = x.shape
    Hp = params["wp1"].shape[1]
    K = nsample
    kparams = prepare_kernel_params(params, C, Hp)

    x_bf = x.astype(jnp.bfloat16)

    # --- key/value projection (Pallas), large HBM-bound tiles, bf16 outputs
    tile_kv = min(tile_n_kv, _round_up(N, 8))
    n_pad_kv = _round_up(N, tile_kv)
    x_kv_in = jnp.pad(x_bf, ((0, n_pad_kv - N), (0, 0)))
    x_k, x_v = to_kv_pallas(x_kv_in, kparams["w_k"], kparams["w_v"], tile_kv)

    # --- KNN grouping (plain-JAX glue; data-dependent top-k + gather)
    # TODO(synk): for production N, gather in-kernel via scalar-prefetched idx.
    idx = knn_idx(p, K)                                          # (N, K)
    pr = p[idx] - p[:, None, :]                                  # (N, K, 3) f32
    xk_g = x_k[idx]                                              # (N, K, C) bf16
    xv_g = x_v[idx]                                              # (N, K, C) bf16

    # --- attention kernel; tile clamped so the single parallel grid axis keeps
    # >= 2 steps (v7x megacore), 512 cap (v7x 64 MiB VMEM), multiple of 32.
    tile_n = min(tile_n, max(32, _round_up((N + 1) // 2, 32)))
    n_pad = _round_up(N, tile_n)
    pad = n_pad - N

    x_in = jnp.pad(x_bf, ((0, pad), (0, 0)))
    xk_g = jnp.pad(xk_g, ((0, pad), (0, 0), (0, 0)))
    xv_g = jnp.pad(xv_g, ((0, pad), (0, 0), (0, 0)))
    pr_flat = jnp.pad(pr, ((0, pad), (0, 0), (0, 0))).reshape(n_pad * K, 3)

    out = pt_layer_pallas(x_in, xk_g, xv_g, pr_flat, kparams, tile_n)
    return out[:N]


def reference_forward(p, x, kparams, nsample):
    """Plain-JAX reference mirroring the kernel's precision path
    (bf16 weight/feature storage, f32 accumulation, folded BN)."""
    N, C = x.shape
    Hp = kparams["wp2"].shape[0]
    vec = kparams["vec"]
    wp1 = vec[0:3, :Hp]
    bias_p1 = vec[3:4, :Hp]
    bp2 = vec[4:5, :C]
    bnw1_s = vec[5:6, :C]
    bnw1_b = vec[6:7, :C]
    bias_w1 = vec[7:8, :2 * C]
    bw2 = vec[8:9, :C]

    bdot = lambda a, b: jnp.dot(a.astype(jnp.bfloat16), b,
                                preferred_element_type=jnp.float32)

    x_bf = x.astype(jnp.bfloat16)
    x_q = bdot(x_bf, kparams["w_q"])                               # (N, C) f32
    x_k = bdot(x_bf, kparams["w_k"]).astype(jnp.bfloat16)          # (N, C) bf16
    x_v = bdot(x_bf, kparams["w_v"]).astype(jnp.bfloat16)          # (N, C) bf16

    idx = knn_idx(p, nsample)
    p_r = p[idx] - p[:, None, :]                                   # (N, K, 3)
    xk_g = x_k[idx].astype(jnp.float32)
    xv_g = x_v[idx].astype(jnp.float32)

    pr2 = p_r.reshape(-1, 3)
    h = (pr2[:, 0:1] * wp1[0:1, :] + pr2[:, 1:2] * wp1[1:2, :]
         + pr2[:, 2:3] * wp1[2:3, :] + bias_p1)
    h = jnp.maximum(h, 0.0)
    pr_feat = (bdot(h, kparams["wp2"]) + bp2).reshape(N, nsample, C)

    w = (xk_g - x_q[:, None, :] + pr_feat).reshape(-1, C)
    w = jnp.maximum(w * bnw1_s + bnw1_b, 0.0)
    w = bdot(w, kparams["ww1"]) + bias_w1
    w = jnp.maximum(w, 0.0)
    w = (bdot(w, kparams["ww2"]) + bw2).reshape(N, nsample, C)
    w = jax.nn.softmax(w, axis=1)
    return jnp.sum((xv_g + pr_feat) * w, axis=1)


# ----------------------------------------------------------------------------
# Deterministic parameter init (matches module __init__ shapes).
# ----------------------------------------------------------------------------
def xavier_uniform(key, fan_in, fan_out):
    limit = (6.0 / (fan_in + fan_out)) ** 0.5
    return jax.random.uniform(key, (fan_in, fan_out), jnp.float32, -limit, limit)


def init_params(key, C, Hp):
    ks = jax.random.split(key, 5)
    bn_scale = jnp.float32(1.0 / (1.0 + EPS) ** 0.5)  # eval-mode BN, fresh stats
    bn = lambda d: (jnp.full((1, d), bn_scale, jnp.float32),
                    jnp.zeros((1, d), jnp.float32))
    bnp_s, bnp_b = bn(Hp)
    bnw1_s, bnw1_b = bn(C)
    bnw2_s, bnw2_b = bn(2 * C)
    return dict(
        w_qkv=xavier_uniform(ks[0], C, 3 * C),        # Linear(C, 3C, bias=False)
        wp1=xavier_uniform(ks[1], 3, Hp),             # Linear(3, Hp, bias=False)
        bnp_s=bnp_s, bnp_b=bnp_b,
        wp2=xavier_uniform(ks[2], Hp, C),             # Linear(Hp, C)
        bp2=jnp.zeros((1, C), jnp.float32),
        bnw1_s=bnw1_s, bnw1_b=bnw1_b,
        ww1=xavier_uniform(ks[3], C, 2 * C),          # Linear(C, 2C, bias=False)
        bnw2_s=bnw2_s, bnw2_b=bnw2_b,
        ww2=xavier_uniform(ks[4], 2 * C, C),          # Linear(2C, C)
        bw2=jnp.zeros((1, C), jnp.float32),
    )


if __name__ == "__main__":
    # points, in_planes, nsample, pos_mlp_hidden_dim
    # N chosen non-multiple of the tile to exercise the tail-padding path.
    N, C, K, Hp = 500, 32, 16, 48

    key = jax.random.PRNGKey(0)
    k_p, k_x, k_w = jax.random.split(key, 3)
    p = jax.random.normal(k_p, (N, 3), jnp.float32)
    x = jax.random.normal(k_x, (N, C), jnp.float32)
    o = jnp.array([N], jnp.int32)  # single-batch offsets

    params = init_params(k_w, C, Hp)

    out = point_transformer_forward(p, x, o, params, nsample=K)
    out = jax.block_until_ready(out)

    kparams = prepare_kernel_params(params, C, Hp)
    ref = reference_forward(p, x, kparams, nsample=K)

    assert out.shape == (N, C)
    assert bool(jnp.all(jnp.isfinite(out)))
    max_err = float(jnp.max(jnp.abs(out - ref)))
    # tolerance covers bf16 feature/weight storage + approx reciprocal
    assert bool(jnp.allclose(out, ref, atol=3e-2, rtol=3e-2)), \
        f"mismatch vs JAX reference (max abs err {max_err})"

    print("KERNEL_OK")
</pallas_src>

<mosaic_0001>
module attributes {stable_mosaic.version = 11 : i64} {
  func.func @kv_kernel(%arg0: i32, %arg1: memref<504x32xbf16, #tpu.memory_space<vmem>>, %arg2: memref<32x32xbf16, #tpu.memory_space<vmem>>, %arg3: memref<32x32xbf16, #tpu.memory_space<vmem>>, %arg4: memref<504x32xbf16, #tpu.memory_space<vmem>>, %arg5: memref<504x32xbf16, #tpu.memory_space<vmem>>) attributes {dimension_semantics = [#tpu.dimension_semantics<parallel>], iteration_bounds = array<i64: 1>, scalar_prefetch = 0 : i64, scratch_operands = 0 : i64, tpu.core_type = #tpu.core_type<tc>, window_params = [{transform_indices = @transform_0, window_bounds = array<i64: 504, 32>}, {pipeline_mode = #tpu.pipeline_mode<synchronous>, transform_indices = @transform_1, window_bounds = array<i64: 32, 32>}, {pipeline_mode = #tpu.pipeline_mode<synchronous>, transform_indices = @transform_2, window_bounds = array<i64: 32, 32>}, {transform_indices = @transform_3, window_bounds = array<i64: 504, 32>}, {transform_indices = @transform_4, window_bounds = array<i64: 504, 32>}]} {
    %c0 = arith.constant 0 : index
    %c0_0 = arith.constant 0 : index
    %0 = vector.load %arg1[%c0, %c0_0] : memref<504x32xbf16, #tpu.memory_space<vmem>>, vector<504x32xbf16>
    %c0_1 = arith.constant 0 : index
    %c0_2 = arith.constant 0 : index
    %1 = vector.load %arg2[%c0_1, %c0_2] : memref<32x32xbf16, #tpu.memory_space<vmem>>, vector<32x32xbf16>
    %cst = arith.constant dense<0.000000e+00> : vector<504x32xf32>
    %2 = tpu.matmul %0, %1, %cst {dimension_numbers = #tpu.dot_dimension_numbers<[1], [0], [0], [1], [0, 0, 1, 1], [], []>} : vector<504x32xbf16>, vector<32x32xbf16>, vector<504x32xf32> -> vector<504x32xf32>
    %3 = arith.truncf %2 : vector<504x32xf32> to vector<504x32xbf16>
    %c0_3 = arith.constant 0 : index
    %c0_4 = arith.constant 0 : index
    %4 = vector.load %arg4[%c0_3, %c0_4] : memref<504x32xbf16, #tpu.memory_space<vmem>>, vector<504x32xbf16>
    tpu.vector_store %arg4[%c0_3, %c0_4], %3 {strides = array<i32>} : memref<504x32xbf16, #tpu.memory_space<vmem>>, vector<504x32xbf16>,
    %c0_5 = arith.constant 0 : index
    %c0_6 = arith.constant 0 : index
    %5 = vector.load %arg3[%c0_5, %c0_6] : memref<32x32xbf16, #tpu.memory_space<vmem>>, vector<32x32xbf16>
    %cst_7 = arith.constant dense<0.000000e+00> : vector<504x32xf32>
    %6 = tpu.matmul %0, %5, %cst_7 {dimension_numbers = #tpu.dot_dimension_numbers<[1], [0], [0], [1], [0, 0, 1, 1], [], []>} : vector<504x32xbf16>, vector<32x32xbf16>, vector<504x32xf32> -> vector<504x32xf32>
    %7 = arith.truncf %6 : vector<504x32xf32> to vector<504x32xbf16>
    %c0_8 = arith.constant 0 : index
    %c0_9 = arith.constant 0 : index
    %8 = vector.load %arg5[%c0_8, %c0_9] : memref<504x32xbf16, #tpu.memory_space<vmem>>, vector<504x32xbf16>
    tpu.vector_store %arg5[%c0_8, %c0_9], %7 {strides = array<i32>} : memref<504x32xbf16, #tpu.memory_space<vmem>>, vector<504x32xbf16>,
    return
  }
  func.func @transform_0(%arg0: i32) -> (i32, i32) {
    %c0_i32 = arith.constant 0 : i32
    %c0_i32_0 = arith.constant 0 : i32
    return %arg0, %c0_i32 : i32, i32
  }
  func.func @transform_1(%arg0: i32) -> (i32, i32) {
    %c0_i32 = arith.constant 0 : i32
    %c0_i32_0 = arith.constant 0 : i32
    %c0_i32_1 = arith.constant 0 : i32
    return %c0_i32, %c0_i32_0 : i32, i32
  }
  func.func @transform_2(%arg0: i32) -> (i32, i32) {
    %c0_i32 = arith.constant 0 : i32
    %c0_i32_0 = arith.constant 0 : i32
    %c0_i32_1 = arith.constant 0 : i32
    return %c0_i32, %c0_i32_0 : i32, i32
  }
  func.func @transform_3(%arg0: i32) -> (i32, i32) {
    %c0_i32 = arith.constant 0 : i32
    %c0_i32_0 = arith.constant 0 : i32
    return %arg0, %c0_i32 : i32, i32
  }
  func.func @transform_4(%arg0: i32) -> (i32, i32) {
    %c0_i32 = arith.constant 0 : i32
    %c0_i32_0 = arith.constant 0 : i32
    return %arg0, %c0_i32 : i32, i32
  }
}

</mosaic_0001>

<llo_original>
// kernel: tpu_custom_call.1
$region0: #{tpu_custom_call.1}
  #allocation0 [shape = 'u32[]', space=smem, size = 0x4, offset = 0x4, fixed_abs, tag = 'smem constant byte address 0x4 - core index']
  #allocation1 [shape = 'u32[144,128]{1,0:T(1,128)}', space=vmem, size = 0x12000, scoped, tag = 'internal scratch']
  %s0 = inlined_call_operand.vmem [shape: bf16[504,32], index: 0, kind: input, shape index: {}]
  %s1 = inlined_call_operand.vmem [shape: bf16[32,32], index: 1, kind: input, shape index: {}]
  %s2 = inlined_call_operand.vmem [shape: bf16[32,32], index: 2, kind: input, shape index: {}]
  %s3 = inlined_call_operand.vmem [shape: bf16[504,32], index: 3, kind: output, shape index: {0}]
  %s4 = inlined_call_operand.vmem [shape: bf16[504,32], index: 4, kind: output, shape index: {1}]
  %5 = xla_tuple %s3, %s4
  %s6 = sld [smem:[#allocation0]]
  $region30: #{tpu_custom_call.1} parent=0
    _
  %s8 = ssub.s32 1, %s6
  %s9 = scalar_select 0, %s8, %s6
  // Predicated region
  $region2: #{tpu_custom_call.1} parent=0 // pred_check
    _
  $region3: #{tpu_custom_call.1} parent=0 // pred_check_branch
    %11 = sbr.rel (0) target = $region5
  $region4: #{tpu_custom_call.1} parent=0 // pred_region
    _
  $region5: #{tpu_custom_call.1} parent=0 // pred_fallthru
    _
  // Predicated region
  $region6: #{tpu_custom_call.1} parent=0 // pred_check
    _
  $region7: #{tpu_custom_call.1} parent=0 // pred_check_branch
    %13 = sbr.rel (0) target = $region9
  $region8: #{tpu_custom_call.1} parent=0 // pred_region
    _
  $region9: #{tpu_custom_call.1} parent=0 // pred_fallthru
    _
  // Predicated region
  $region10: #{tpu_custom_call.1} parent=0 // pred_check
    _
  $region11: #{tpu_custom_call.1} parent=0 // pred_check_branch
    %15 = sbr.rel (0) target = $region13
  $region12: #{tpu_custom_call.1} parent=0 // pred_region
    _
  $region13: #{tpu_custom_call.1} parent=0 // pred_fallthru
    _
  %v17 = vld [vmem:[%s0] sm:$0xf]
  %v18 = vld [vmem:[%s0 + $0x4] sm:$0xf]
  %v19 = vld [vmem:[%s0 + $0x8] sm:$0xf]
  %v20 = vld [vmem:[%s0 + $0xc] sm:$0xf]
  %v21 = vld [vmem:[%s0 + $0x10] sm:$0xf]
  %v22 = vld [vmem:[%s0 + $0x14] sm:$0xf]
  %v23 = vld [vmem:[%s0 + $0x18] sm:$0xf]
  %v24 = vld [vmem:[%s0 + $0x1c] sm:$0xf]
  %v25 = vld [vmem:[%s0 + $0x20] sm:$0xf]
  %v26 = vld [vmem:[%s0 + $0x24] sm:$0xf]
  %v27 = vld [vmem:[%s0 + $0x28] sm:$0xf]
  %v28 = vld [vmem:[%s0 + $0x2c] sm:$0xf]
  %v29 = vld [vmem:[%s0 + $0x30] sm:$0xf]
  %v30 = vld [vmem:[%s0 + $0x34] sm:$0xf]
  %v31 = vld [vmem:[%s0 + $0x38] sm:$0xf]
  %v32 = vld [vmem:[%s0 + $0x3c] sm:$0xf]
  %v33 = vld [vmem:[%s0 + $0x40] sm:$0xf]
  %v34 = vld [vmem:[%s0 + $0x44] sm:$0xf]
  %v35 = vld [vmem:[%s0 + $0x48] sm:$0xf]
  %v36 = vld [vmem:[%s0 + $0x4c] sm:$0xf]
  %v37 = vld [vmem:[%s0 + $0x50] sm:$0xf]
  %v38 = vld [vmem:[%s0 + $0x54] sm:$0xf]
  %v39 = vld [vmem:[%s0 + $0x58] sm:$0xf]
  %v40 = vld [vmem:[%s0 + $0x5c] sm:$0xf]
  %v41 = vld [vmem:[%s0 + $0x60] sm:$0xf]
  %v42 = vld [vmem:[%s0 + $0x64] sm:$0xf]
  %v43 = vld [vmem:[%s0 + $0x68] sm:$0xf]
  %v44 = vld [vmem:[%s0 + $0x6c] sm:$0xf]
  %v45 = vld [vmem:[%s0 + $0x70] sm:$0xf]
  %v46 = vld [vmem:[%s0 + $0x74] sm:$0xf]
  %v47 = vld [vmem:[%s0 + $0x78] sm:$0xf]
  %v48 = vld [vmem:[%s0 + $0x7c] sm:$0xf]
  %v49 = vld [vmem:[%s0 + $0x80] sm:$0xf]
  %v50 = vld [vmem:[%s0 + $0x84] sm:$0xf]
  %v51 = vld [vmem:[%s0 + $0x88] sm:$0xf]
  %v52 = vld [vmem:[%s0 + $0x8c] sm:$0xf]
  %v53 = vld [vmem:[%s0 + $0x90] sm:$0xf]
  %v54 = vld [vmem:[%s0 + $0x94] sm:$0xf]
  %v55 = vld [vmem:[%s0 + $0x98] sm:$0xf]
  %v56 = vld [vmem:[%s0 + $0x9c] sm:$0xf]
  %v57 = vld [vmem:[%s0 + $0xa0] sm:$0xf]
  %v58 = vld [vmem:[%s0 + $0xa4] sm:$0xf]
  %v59 = vld [vmem:[%s0 + $0xa8] sm:$0xf]
  %v60 = vld [vmem:[%s0 + $0xac] sm:$0xf]
  %v61 = vld [vmem:[%s0 + $0xb0] sm:$0xf]
  %v62 = vld [vmem:[%s0 + $0xb4] sm:$0xf]
  %v63 = vld [vmem:[%s0 + $0xb8] sm:$0xf]
  %v64 = vld [vmem:[%s0 + $0xbc] sm:$0xf]
  %v65 = vld [vmem:[%s0 + $0xc0] sm:$0xf]
  %v66 = vld [vmem:[%s0 + $0xc4] sm:$0xf]
  %v67 = vld [vmem:[%s0 + $0xc8] sm:$0xf]
  %v68 = vld [vmem:[%s0 + $0xcc] sm:$0xf]
  %v69 = vld [vmem:[%s0 + $0xd0] sm:$0xf]
  %v70 = vld [vmem:[%s0 + $0xd4] sm:$0xf]
  %v71 = vld [vmem:[%s0 + $0xd8] sm:$0xf]
  %v72 = vld [vmem:[%s0 + $0xdc] sm:$0xf]
  %v73 = vld [vmem:[%s0 + $0xe0] sm:$0xf]
  %v74 = vld [vmem:[%s0 + $0xe4] sm:$0xf]
  %v75 = vld [vmem:[%s0 + $0xe8] sm:$0xf]
  %v76 = vld [vmem:[%s0 + $0xec] sm:$0xf]
  %v77 = vld [vmem:[%s0 + $0xf0] sm:$0xf]
  %v78 = vld [vmem:[%s0 + $0xf4] sm:$0xf]
  %v79 = vld [vmem:[%s0 + $0xf8] sm:$0xf]
  %v80 = vld [vmem:[%s1] sm:$0xf]
  %v81 = vld [vmem:[%s1 + $0x4] sm:$0xf]
  %v82 = vld [vmem:[%s1 + $0x8] sm:$0xf]
  %v83 = vld [vmem:[%s1 + $0xc] sm:$0xf]
  %v147 = vunpack.c.l.b16 %v17
  %v148 = vunpack.c.l.b16 %v18
  %v149 = vunpack.c.l.b16 %v19
  %v150 = vunpack.c.l.b16 %v20
  %v151 = vunpack.c.l.b16 %v21
  %v152 = vunpack.c.l.b16 %v22
  %v153 = vunpack.c.l.b16 %v23
  %v154 = vunpack.c.l.b16 %v24
  %v155 = vunpack.c.l.b16 %v25
  %v156 = vunpack.c.l.b16 %v26
  %v157 = vunpack.c.l.b16 %v27
  %v158 = vunpack.c.l.b16 %v28
  %v159 = vunpack.c.l.b16 %v29
  %v160 = vunpack.c.l.b16 %v30
  %v161 = vunpack.c.l.b16 %v31
  %v162 = vunpack.c.l.b16 %v32
  %v163 = vunpack.c.l.b16 %v33
  %v164 = vunpack.c.l.b16 %v34
  %v165 = vunpack.c.l.b16 %v35
  %v166 = vunpack.c.l.b16 %v36
  %v167 = vunpack.c.l.b16 %v37
  %v168 = vunpack.c.l.b16 %v38
  %v169 = vunpack.c.l.b16 %v39
  %v170 = vunpack.c.l.b16 %v40
  %v171 = vunpack.c.l.b16 %v41
  %v172 = vunpack.c.l.b16 %v42
  %v173 = vunpack.c.l.b16 %v43
  %v174 = vunpack.c.l.b16 %v44
  %v175 = vunpack.c.l.b16 %v45
  %v176 = vunpack.c.l.b16 %v46
  %v177 = vunpack.c.l.b16 %v47
  %v178 = vunpack.c.l.b16 %v48
  %v179 = vunpack.c.l.b16 %v49
  %v180 = vunpack.c.l.b16 %v50
  %v181 = vunpack.c.l.b16 %v51
  %v182 = vunpack.c.l.b16 %v52
  %v183 = vunpack.c.l.b16 %v53
  %v184 = vunpack.c.l.b16 %v54
  %v185 = vunpack.c.l.b16 %v55
  %v186 = vunpack.c.l.b16 %v56
  %v187 = vunpack.c.l.b16 %v57
  %v188 = vunpack.c.l.b16 %v58
  %v189 = vunpack.c.l.b16 %v59
  %v190 = vunpack.c.l.b16 %v60
  %v191 = vunpack.c.l.b16 %v61
  %v192 = vunpack.c.l.b16 %v62
  %v193 = vunpack.c.l.b16 %v63
  %v194 = vunpack.c.l.b16 %v64
  %v195 = vunpack.c.l.b16 %v65
  %v196 = vunpack.c.l.b16 %v66
  %v197 = vunpack.c.l.b16 %v67
  %v198 = vunpack.c.l.b16 %v68
  %v199 = vunpack.c.l.b16 %v69
  %v200 = vunpack.c.l.b16 %v70
  %v201 = vunpack.c.l.b16 %v71
  %v202 = vunpack.c.l.b16 %v72
  %v203 = vunpack.c.l.b16 %v73
  %v204 = vunpack.c.l.b16 %v74
  %v205 = vunpack.c.l.b16 %v75
  %v206 = vunpack.c.l.b16 %v76
  %v207 = vunpack.c.l.b16 %v77
  %v208 = vunpack.c.l.b16 %v78
  %v209 = vunpack.c.l.b16 %v79
  %v210 = vpack.c.b16 %v148, %v147
  %v211 = vpack.c.b16 %v150, %v149
  %v212 = vpack.c.b16 %v152, %v151
  %v213 = vpack.c.b16 %v154, %v153
  %v214 = vpack.c.b16 %v156, %v155
  %v215 = vpack.c.b16 %v158, %v157
  %v216 = vpack.c.b16 %v160, %v159
  %v217 = vpack.c.b16 %v162, %v161
  %v218 = vpack.c.b16 %v164, %v163
  %v219 = vpack.c.b16 %v166, %v165
  %v220 = vpack.c.b16 %v168, %v167
  %v221 = vpack.c.b16 %v170, %v169
  %v222 = vpack.c.b16 %v172, %v171
  %v223 = vpack.c.b16 %v174, %v173
  %v224 = vpack.c.b16 %v176, %v175
  %v225 = vpack.c.b16 %v178, %v177
  %v226 = vpack.c.b16 %v180, %v179
  %v227 = vpack.c.b16 %v182, %v181
  %v228 = vpack.c.b16 %v184, %v183
  %v229 = vpack.c.b16 %v186, %v185
  %v230 = vpack.c.b16 %v188, %v187
  %v231 = vpack.c.b16 %v190, %v189
  %v232 = vpack.c.b16 %v192, %v191
  %v233 = vpack.c.b16 %v194, %v193
  %v234 = vpack.c.b16 %v196, %v195
  %v235 = vpack.c.b16 %v198, %v197
  %v236 = vpack.c.b16 %v200, %v199
  %v237 = vpack.c.b16 %v202, %v201
  %v238 = vpack.c.b16 %v204, %v203
  %v239 = vpack.c.b16 %v206, %v205
  %v240 = vpack.c.b16 %v208, %v207
  %v241 = vpack.c.b16 %v209, %v209
  %v246 = vunpack.c.l.b16 %v80
  %v247 = vunpack.c.l.b16 %v81
  %v248 = vunpack.c.l.b16 %v82
  %v249 = vunpack.c.l.b16 %v83
  %v250 = vpack.c.b16 %v247, %v246
  %v251 = vpack.c.b16 %v249, %v248
  %vm254 = vcmask 261120
  %v256 = vsel %vm254, %v210, 0
  %v259 = vsel %vm254, %v211, 0
  %v262 = vsel %vm254, %v212, 0
  %v265 = vsel %vm254, %v213, 0
  %v268 = vsel %vm254, %v214, 0
  %v271 = vsel %vm254, %v215, 0
  %v274 = vsel %vm254, %v216, 0
  %v277 = vsel %vm254, %v217, 0
  %v280 = vsel %vm254, %v218, 0
  %v283 = vsel %vm254, %v219, 0
  %v286 = vsel %vm254, %v220, 0
  %v289 = vsel %vm254, %v221, 0
  %v292 = vsel %vm254, %v222, 0
  %v295 = vsel %vm254, %v223, 0
  %v298 = vsel %vm254, %v224, 0
  %v301 = vsel %vm254, %v225, 0
  %v304 = vsel %vm254, %v226, 0
  %v307 = vsel %vm254, %v227, 0
  %v310 = vsel %vm254, %v228, 0
  %v313 = vsel %vm254, %v229, 0
  %v316 = vsel %vm254, %v230, 0
  %v319 = vsel %vm254, %v231, 0
  %v322 = vsel %vm254, %v232, 0
  %v325 = vsel %vm254, %v233, 0
  %v328 = vsel %vm254, %v234, 0
  %v331 = vsel %vm254, %v235, 0
  %v334 = vsel %vm254, %v236, 0
  %v337 = vsel %vm254, %v237, 0
  %v340 = vsel %vm254, %v238, 0
  %v343 = vsel %vm254, %v239, 0
  %v346 = vsel %vm254, %v240, 0
  %v349 = vsel %vm254, %v241, 0
  %351 = vmatprep.subr.bf16.mxu0 0
  %352 = vmatpush1.bf16.msra.mxu0 0
  %353 = vmatprep.subr.bf16.mxu0 0
  %354 = vmatpush1.bf16.msra.mxu0 0
  %355 = vmatprep.subr.bf16.mxu0 0
  %356 = vmatpush1.bf16.msra.mxu0 0
  %357 = vmatprep.subr.bf16.mxu0 0
  %358 = vmatpush1.bf16.msra.mxu0 0
  %359 = vmatprep.subr.bf16.mxu0 0
  %360 = vmatpush1.bf16.msra.mxu0 0
  %361 = vmatprep.subr.bf16.mxu0 0
  %362 = vmatpush1.bf16.msra.mxu0 0
  %363 = vmatprep.subr.bf16.mxu0 0
  %364 = vmatpush1.bf16.msra.mxu0 %v251
  %365 = vmatprep.subr.bf16.mxu0 0
  %366 = vmatpush1.bf16.msra.mxu0 %v250
  %367 = vmatprep.subr.bf16.mxu0 0
  %368 = vmatpush2.bf16.msra.mxu0 0
  %369 = vmatprep.subr.bf16.mxu0 0
  %370 = vmatpush2.bf16.msra.mxu0 0
  %371 = vmatprep.subr.bf16.mxu0 0
  %372 = vmatpush2.bf16.msra.mxu0 0
  %373 = vmatprep.subr.bf16.mxu0 0
  %374 = vmatpush2.bf16.msra.mxu0 0
  %375 = vmatprep.subr.bf16.mxu0 0
  %376 = vmatpush2.bf16.msra.mxu0 0
  %377 = vmatprep.subr.bf16.mxu0 0
  %378 = vmatpush2.bf16.msra.mxu0 0
  %379 = vmatprep.subr.bf16.mxu0 0
  %380 = vmatpush2.bf16.msra.mxu0 0
  %381 = vmatprep.subr.bf16.mxu0 0
  %382 = vmatpush2.bf16.msra.mxu0 0
  %383 = vmatprep.mubr.bf16.mxu0 0
  %384 = vmatmul.mubr.bf16.gmra.mxu0 %v256
  %v385 = vpop.f32.mrf.mxu0
  %v386 = vadd.f32 0.0, %v385
  %v387 = vpop.f32.mrf.mxu0
  %v388 = vpop.f32.mrf.mxu0
  %v389 = vadd.f32 0.0, %v388
  %v390 = vpop.f32.mrf.mxu0
  %391 = vmatprep.mubr.bf16.mxu0 0
  %392 = vmatmul.mubr.bf16.gmra.mxu0 %v259
  %v393 = vpop.f32.mrf.mxu0
  %v394 = vadd.f32 0.0, %v393
  %v395 = vpop.f32.mrf.mxu0
  %v396 = vpop.f32.mrf.mxu0
  %v397 = vadd.f32 0.0, %v396
  %v398 = vpop.f32.mrf.mxu0
  %399 = vmatprep.mubr.bf16.mxu0 0
  %400 = vmatmul.mubr.bf16.gmra.mxu0 %v262
  %v401 = vpop.f32.mrf.mxu0
  %v402 = vadd.f32 0.0, %v401
  %v403 = vpop.f32.mrf.mxu0
  %v404 = vpop.f32.mrf.mxu0
  %v405 = vadd.f32 0.0, %v404
  %v406 = vpop.f32.mrf.mxu0
  %407 = vmatprep.mubr.bf16.mxu0 0
  %408 = vmatmul.mubr.bf16.gmra.mxu0 %v265
  %v409 = vpop.f32.mrf.mxu0
  %v410 = vadd.f32 0.0, %v409
  %v411 = vpop.f32.mrf.mxu0
  %v412 = vpop.f32.mrf.mxu0
  %v413 = vadd.f32 0.0, %v412
  %v414 = vpop.f32.mrf.mxu0
  %415 = vmatprep.mubr.bf16.mxu0 0
  %416 = vmatmul.mubr.bf16.gmra.mxu0 %v268
  %v417 = vpop.f32.mrf.mxu0
  %v418 = vadd.f32 0.0, %v417
  %v419 = vpop.f32.mrf.mxu0
  %v420 = vpop.f32.mrf.mxu0
  %v421 = vadd.f32 0.0, %v420
  %v422 = vpop.f32.mrf.mxu0
  %423 = vmatprep.mubr.bf16.mxu0 0
  %424 = vmatmul.mubr.bf16.gmra.mxu0 %v271
  %v425 = vpop.f32.mrf.mxu0
  %v426 = vadd.f32 0.0, %v425
  %v427 = vpop.f32.mrf.mxu0
  %v428 = vpop.f32.mrf.mxu0
  %v429 = vadd.f32 0.0, %v428
  %v430 = vpop.f32.mrf.mxu0
  %431 = vmatprep.mubr.bf16.mxu0 0
  %432 = vmatmul.mubr.bf16.gmra.mxu0 %v274
  %v433 = vpop.f32.mrf.mxu0
  %v434 = vadd.f32 0.0, %v433
  %v435 = vpop.f32.mrf.mxu0
  %v436 = vpop.f32.mrf.mxu0
  %v437 = vadd.f32 0.0, %v436
  %v438 = vpop.f32.mrf.mxu0
  %439 = vmatprep.mubr.bf16.mxu0 0
  %440 = vmatmul.mubr.bf16.gmra.mxu0 %v277
  %v441 = vpop.f32.mrf.mxu0
  %v442 = vadd.f32 0.0, %v441
  %v443 = vpop.f32.mrf.mxu0
  %v444 = vpop.f32.mrf.mxu0
  %v445 = vadd.f32 0.0, %v444
  %v446 = vpop.f32.mrf.mxu0
  %447 = vmatprep.mubr.bf16.mxu0 0
  %448 = vmatmul.mubr.bf16.gmra.mxu0 %v280
  %v449 = vpop.f32.mrf.mxu0
  %v450 = vadd.f32 0.0, %v449
  %v451 = vpop.f32.mrf.mxu0
  %v452 = vpop.f32.mrf.mxu0
  %v453 = vadd.f32 0.0, %v452
  %v454 = vpop.f32.mrf.mxu0
  %455 = vmatprep.mubr.bf16.mxu0 0
  %456 = vmatmul.mubr.bf16.gmra.mxu0 %v283
  %v457 = vpop.f32.mrf.mxu0
  %v458 = vadd.f32 0.0, %v457
  %v459 = vpop.f32.mrf.mxu0
  %v460 = vpop.f32.mrf.mxu0
  %v461 = vadd.f32 0.0, %v460
  %v462 = vpop.f32.mrf.mxu0
  %463 = vmatprep.mubr.bf16.mxu0 0
  %464 = vmatmul.mubr.bf16.gmra.mxu0 %v286
  %v465 = vpop.f32.mrf.mxu0
  %v466 = vadd.f32 0.0, %v465
  %v467 = vpop.f32.mrf.mxu0
  %v468 = vpop.f32.mrf.mxu0
  %v469 = vadd.f32 0.0, %v468
  %v470 = vpop.f32.mrf.mxu0
  %471 = vmatprep.mubr.bf16.mxu0 0
  %472 = vmatmul.mubr.bf16.gmra.mxu0 %v289
  %v473 = vpop.f32.mrf.mxu0
  %v474 = vadd.f32 0.0, %v473
  %v475 = vpop.f32.mrf.mxu0
  %v476 = vpop.f32.mrf.mxu0
  %v477 = vadd.f32 0.0, %v476
  %v478 = vpop.f32.mrf.mxu0
  %479 = vmatprep.mubr.bf16.mxu0 0
  %480 = vmatmul.mubr.bf16.gmra.mxu0 %v292
  %v481 = vpop.f32.mrf.mxu0
  %v482 = vadd.f32 0.0, %v481
  %v483 = vpop.f32.mrf.mxu0
  %v484 = vpop.f32.mrf.mxu0
  %v485 = vadd.f32 0.0, %v484
  %v486 = vpop.f32.mrf.mxu0
  %487 = vmatprep.mubr.bf16.mxu0 0
  %488 = vmatmul.mubr.bf16.gmra.mxu0 %v295
  %v489 = vpop.f32.mrf.mxu0
  %v490 = vadd.f32 0.0, %v489
  %v491 = vpop.f32.mrf.mxu0
  %v492 = vpop.f32.mrf.mxu0
  %v493 = vadd.f32 0.0, %v492
  %v494 = vpop.f32.mrf.mxu0
  %495 = vmatprep.mubr.bf16.mxu0 0
  %496 = vmatmul.mubr.bf16.gmra.mxu0 %v298
  %v497 = vpop.f32.mrf.mxu0
  %v498 = vadd.f32 0.0, %v497
  %v499 = vpop.f32.mrf.mxu0
  %v500 = vpop.f32.mrf.mxu0
  %v501 = vadd.f32 0.0, %v500
  %v502 = vpop.f32.mrf.mxu0
  %503 = vmatprep.mubr.bf16.mxu0 0
  %504 = vmatmul.mubr.bf16.gmra.mxu0 %v301
  %v505 = vpop.f32.mrf.mxu0
  %v506 = vadd.f32 0.0, %v505
  %v507 = vpop.f32.mrf.mxu0
  %v508 = vpop.f32.mrf.mxu0
  %v509 = vadd.f32 0.0, %v508
  %v510 = vpop.f32.mrf.mxu0
  %511 = vmatprep.mubr.bf16.mxu0 0
  %512 = vmatmul.mubr.bf16.gmra.mxu0 %v304
  %v513 = vpop.f32.mrf.mxu0
  %v514 = vadd.f32 0.0, %v513
  %v515 = vpop.f32.mrf.mxu0
  %v516 = vpop.f32.mrf.mxu0
  %v517 = vadd.f32 0.0, %v516
  %v518 = vpop.f32.mrf.mxu0
  %519 = vmatprep.mubr.bf16.mxu0 0
  %520 = vmatmul.mubr.bf16.gmra.mxu0 %v307
  %v521 = vpop.f32.mrf.mxu0
  %v522 = vadd.f32 0.0, %v521
  %v523 = vpop.f32.mrf.mxu0
  %v524 = vpop.f32.mrf.mxu0
  %v525 = vadd.f32 0.0, %v524
  %v526 = vpop.f32.mrf.mxu0
  %527 = vmatprep.mubr.bf16.mxu0 0
  %528 = vmatmul.mubr.bf16.gmra.mxu0 %v310
  %v529 = vpop.f32.mrf.mxu0
  %v530 = vadd.f32 0.0, %v529
  %v531 = vpop.f32.mrf.mxu0
  %v532 = vpop.f32.mrf.mxu0
  %v533 = vadd.f32 0.0, %v532
  %v534 = vpop.f32.mrf.mxu0
  %535 = vmatprep.mubr.bf16.mxu0 0
  %536 = vmatmul.mubr.bf16.gmra.mxu0 %v313
  %v537 = vpop.f32.mrf.mxu0
  %v538 = vadd.f32 0.0, %v537
  %v539 = vpop.f32.mrf.mxu0
  %v540 = vpop.f32.mrf.mxu0
  %v541 = vadd.f32 0.0, %v540
  %v542 = vpop.f32.mrf.mxu0
  %543 = vmatprep.mubr.bf16.mxu0 0
  %544 = vmatmul.mubr.bf16.gmra.mxu0 %v316
  %v545 = vpop.f32.mrf.mxu0
  %v546 = vadd.f32 0.0, %v545
  %v547 = vpop.f32.mrf.mxu0
  %v548 = vpop.f32.mrf.mxu0
  %v549 = vadd.f32 0.0, %v548
  %v550 = vpop.f32.mrf.mxu0
  %551 = vmatprep.mubr.bf16.mxu0 0
  %552 = vmatmul.mubr.bf16.gmra.mxu0 %v319
  %v553 = vpop.f32.mrf.mxu0
  %v554 = vadd.f32 0.0, %v553
  %v555 = vpop.f32.mrf.mxu0
  %v556 = vpop.f32.mrf.mxu0
  %v557 = vadd.f32 0.0, %v556
  %v558 = vpop.f32.mrf.mxu0
  %559 = vmatprep.mubr.bf16.mxu0 0
  %560 = vmatmul.mubr.bf16.gmra.mxu0 %v322
  %v561 = vpop.f32.mrf.mxu0
  %v562 = vadd.f32 0.0, %v561
  %v563 = vpop.f32.mrf.mxu0
  %v564 = vpop.f32.mrf.mxu0
  %v565 = vadd.f32 0.0, %v564
  %v566 = vpop.f32.mrf.mxu0
  %567 = vmatprep.mubr.bf16.mxu0 0
  %568 = vmatmul.mubr.bf16.gmra.mxu0 %v325
  %v569 = vpop.f32.mrf.mxu0
  %v570 = vadd.f32 0.0, %v569
  %v571 = vpop.f32.mrf.mxu0
  %v572 = vpop.f32.mrf.mxu0
  %v573 = vadd.f32 0.0, %v572
  %v574 = vpop.f32.mrf.mxu0
  %575 = vmatprep.mubr.bf16.mxu0 0
  %576 = vmatmul.mubr.bf16.gmra.mxu0 %v328
  %v577 = vpop.f32.mrf.mxu0
  %v578 = vadd.f32 0.0, %v577
  %v579 = vpop.f32.mrf.mxu0
  %v580 = vpop.f32.mrf.mxu0
  %v581 = vadd.f32 0.0, %v580
  %v582 = vpop.f32.mrf.mxu0
  %583 = vmatprep.mubr.bf16.mxu0 0
  %584 = vmatmul.mubr.bf16.gmra.mxu0 %v331
  %v585 = vpop.f32.mrf.mxu0
  %v586 = vadd.f32 0.0, %v585
  %v587 = vpop.f32.mrf.mxu0
  %v588 = vpop.f32.mrf.mxu0
  %v589 = vadd.f32 0.0, %v588
  %v590 = vpop.f32.mrf.mxu0
  %591 = vmatprep.mubr.bf16.mxu0 0
  %592 = vmatmul.mubr.bf16.gmra.mxu0 %v334
  %v593 = vpop.f32.mrf.mxu0
  %v594 = vadd.f32 0.0, %v593
  %v595 = vpop.f32.mrf.mxu0
  %v596 = vpop.f32.mrf.mxu0
  %v597 = vadd.f32 0.0, %v596
  %v598 = vpop.f32.mrf.mxu0
  %599 = vmatprep.mubr.bf16.mxu0 0
  %600 = vmatmul.mubr.bf16.gmra.mxu0 %v337
  %v601 = vpop.f32.mrf.mxu0
  %v602 = vadd.f32 0.0, %v601
  %v603 = vpop.f32.mrf.mxu0
  %v604 = vpop.f32.mrf.mxu0
  %v605 = vadd.f32 0.0, %v604
  %v606 = vpop.f32.mrf.mxu0
  %607 = vmatprep.mubr.bf16.mxu0 0
  %608 = vmatmul.mubr.bf16.gmra.mxu0 %v340
  %v609 = vpop.f32.mrf.mxu0
  %v610 = vadd.f32 0.0, %v609
  %v611 = vpop.f32.mrf.mxu0
  %v612 = vpop.f32.mrf.mxu0
  %v613 = vadd.f32 0.0, %v612
  %v614 = vpop.f32.mrf.mxu0
  %615 = vmatprep.mubr.bf16.mxu0 0
  %616 = vmatmul.mubr.bf16.gmra.mxu0 %v343
  %v617 = vpop.f32.mrf.mxu0
  %v618 = vadd.f32 0.0, %v617
  %v619 = vpop.f32.mrf.mxu0
  %v620 = vpop.f32.mrf.mxu0
  %v621 = vadd.f32 0.0, %v620
  %v622 = vpop.f32.mrf.mxu0
  %623 = vmatprep.mubr.bf16.mxu0 0
  %624 = vmatmul.mubr.bf16.gmra.mxu0 %v346
  %v625 = vpop.f32.mrf.mxu0
  %v626 = vadd.f32 0.0, %v625
  %v627 = vpop.f32.mrf.mxu0
  %v628 = vpop.f32.mrf.mxu0
  %v629 = vadd.f32 0.0, %v628
  %v630 = vpop.f32.mrf.mxu0
  %631 = vmatprep.mubr.bf16.mxu0 0
  %632 = vmatmul.mubr.bf16.gmra.mxu0 %v349
  %v633 = vpop.f32.mrf.mxu0
  %v634 = vadd.f32 0.0, %v633
  %v635 = vpop.f32.mrf.mxu0
  %v636 = vpop.f32.mrf.mxu0
  %v637 = vpop.f32.mrf.mxu0
  %638 = vdwg.mxu0
  %v639 = vpack.c.bf16 %v389, %v386
  %v640 = vpack.c.bf16 %v397, %v394
  %v641 = vpack.c.bf16 %v405, %v402
  %v642 = vpack.c.bf16 %v413, %v410
  %v643 = vpack.c.bf16 %v421, %v418
  %v644 = vpack.c.bf16 %v429, %v426
  %v645 = vpack.c.bf16 %v437, %v434
  %v646 = vpack.c.bf16 %v445, %v442
  %v647 = vpack.c.bf16 %v453, %v450
  %v648 = vpack.c.bf16 %v461, %v458
  %v649 = vpack.c.bf16 %v469, %v466
  %v650 = vpack.c.bf16 %v477, %v474
  %v651 = vpack.c.bf16 %v485, %v482
  %v652 = vpack.c.bf16 %v493, %v490
  %v653 = vpack.c.bf16 %v501, %v498
  %v654 = vpack.c.bf16 %v509, %v506
  %v655 = vpack.c.bf16 %v517, %v514
  %v656 = vpack.c.bf16 %v525, %v522
  %v657 = vpack.c.bf16 %v533, %v530
  %v658 = vpack.c.bf16 %v541, %v538
  %v659 = vpack.c.bf16 %v549, %v546
  %v660 = vpack.c.bf16 %v557, %v554
  %v661 = vpack.c.bf16 %v565, %v562
  %v662 = vpack.c.bf16 %v573, %v570
  %v663 = vpack.c.bf16 %v581, %v578
  %v664 = vpack.c.bf16 %v589, %v586
  %v665 = vpack.c.bf16 %v597, %v594
  %v666 = vpack.c.bf16 %v605, %v602
  %v667 = vpack.c.bf16 %v613, %v610
  %v668 = vpack.c.bf16 %v621, %v618
  %v669 = vpack.c.bf16 %v629, %v626
  %v670 = vpack.c.bf16 %v634, %v634
  %v703 = vunpack.c.l.b16 %v639
  %v704 = vunpack.c.h.b16 %v639
  %v705 = vunpack.c.l.b16 %v640
  %v706 = vunpack.c.h.b16 %v640
  %v707 = vunpack.c.l.b16 %v641
  %v708 = vunpack.c.h.b16 %v641
  %v709 = vunpack.c.l.b16 %v642
  %v710 = vunpack.c.h.b16 %v642
  %v711 = vunpack.c.l.b16 %v643
  %v712 = vunpack.c.h.b16 %v643
  %v713 = vunpack.c.l.b16 %v644
  %v714 = vunpack.c.h.b16 %v644
  %v715 = vunpack.c.l.b16 %v645
  %v716 = vunpack.c.h.b16 %v645
  %v717 = vunpack.c.l.b16 %v646
  %v718 = vunpack.c.h.b16 %v646
  %v719 = vunpack.c.l.b16 %v647
  %v720 = vunpack.c.h.b16 %v647
  %v721 = vunpack.c.l.b16 %v648
  %v722 = vunpack.c.h.b16 %v648
  %v723 = vunpack.c.l.b16 %v649
  %v724 = vunpack.c.h.b16 %v649
  %v725 = vunpack.c.l.b16 %v650
  %v726 = vunpack.c.h.b16 %v650
  %v727 = vunpack.c.l.b16 %v651
  %v728 = vunpack.c.h.b16 %v651
  %v729 = vunpack.c.l.b16 %v652
  %v730 = vunpack.c.h.b16 %v652
  %v731 = vunpack.c.l.b16 %v653
  %v732 = vunpack.c.h.b16 %v653
  %v733 = vunpack.c.l.b16 %v654
  %v734 = vunpack.c.h.b16 %v654
  %v735 = vunpack.c.l.b16 %v655
  %v736 = vunpack.c.h.b16 %v655
  %v737 = vunpack.c.l.b16 %v656
  %v738 = vunpack.c.h.b16 %v656
  %v739 = vunpack.c.l.b16 %v657
  %v740 = vunpack.c.h.b16 %v657
  %v741 = vunpack.c.l.b16 %v658
  %v742 = vunpack.c.h.b16 %v658
  %v743 = vunpack.c.l.b16 %v659
  %v744 = vunpack.c.h.b16 %v659
  %v745 = vunpack.c.l.b16 %v660
  %v746 = vunpack.c.h.b16 %v660
  %v747 = vunpack.c.l.b16 %v661
  %v748 = vunpack.c.h.b16 %v661
  %v749 = vunpack.c.l.b16 %v662
  %v750 = vunpack.c.h.b16 %v662
  %v751 = vunpack.c.l.b16 %v663
  %v752 = vunpack.c.h.b16 %v663
  %v753 = vunpack.c.l.b16 %v664
  %v754 = vunpack.c.h.b16 %v664
  %v755 = vunpack.c.l.b16 %v665
  %v756 = vunpack.c.h.b16 %v665
  %v757 = vunpack.c.l.b16 %v666
  %v758 = vunpack.c.h.b16 %v666
  %v759 = vunpack.c.l.b16 %v667
  %v760 = vunpack.c.h.b16 %v667
  %v761 = vunpack.c.l.b16 %v668
  %v762 = vunpack.c.h.b16 %v668
  %v763 = vunpack.c.l.b16 %v669
  %v764 = vunpack.c.h.b16 %v669
  %v765 = vunpack.c.l.b16 %v670
  %v766 = vpack.c.b16 %v703, %v703
  %v767 = vpack.c.b16 %v704, %v704
  %v768 = vpack.c.b16 %v705, %v705
  %v769 = vpack.c.b16 %v706, %v706
  %v770 = vpack.c.b16 %v707, %v707
  %v771 = vpack.c.b16 %v708, %v708
  %v772 = vpack.c.b16 %v709, %v709
  %v773 = vpack.c.b16 %v710, %v710
  %v774 = vpack.c.b16 %v711, %v711
  %v775 = vpack.c.b16 %v712, %v712
  %v776 = vpack.c.b16 %v713, %v713
  %v777 = vpack.c.b16 %v714, %v714
  %v778 = vpack.c.b16 %v715, %v715
  %v779 = vpack.c.b16 %v716, %v716
  %v780 = vpack.c.b16 %v717, %v717
  %v781 = vpack.c.b16 %v718, %v718
  %v782 = vpack.c.b16 %v719, %v719
  %v783 = vpack.c.b16 %v720, %v720
  %v784 = vpack.c.b16 %v721, %v721
  %v785 = vpack.c.b16 %v722, %v722
  %v786 = vpack.c.b16 %v723, %v723
  %v787 = vpack.c.b16 %v724, %v724
  %v788 = vpack.c.b16 %v725, %v725
  %v789 = vpack.c.b16 %v726, %v726
  %v790 = vpack.c.b16 %v727, %v727
  %v791 = vpack.c.b16 %v728, %v728
  %v792 = vpack.c.b16 %v729, %v729
  %v793 = vpack.c.b16 %v730, %v730
  %v794 = vpack.c.b16 %v731, %v731
  %v795 = vpack.c.b16 %v732, %v732
  %v796 = vpack.c.b16 %v733, %v733
  %v797 = vpack.c.b16 %v734, %v734
  %v798 = vpack.c.b16 %v735, %v735
  %v799 = vpack.c.b16 %v736, %v736
  %v800 = vpack.c.b16 %v737, %v737
  %v801 = vpack.c.b16 %v738, %v738
  %v802 = vpack.c.b16 %v739, %v739
  %v803 = vpack.c.b16 %v740, %v740
  %v804 = vpack.c.b16 %v741, %v741
  %v805 = vpack.c.b16 %v742, %v742
  %v806 = vpack.c.b16 %v743, %v743
  %v807 = vpack.c.b16 %v744, %v744
  %v808 = vpack.c.b16 %v745, %v745
  %v809 = vpack.c.b16 %v746, %v746
  %v810 = vpack.c.b16 %v747, %v747
  %v811 = vpack.c.b16 %v748, %v748
  %v812 = vpack.c.b16 %v749, %v749
  %v813 = vpack.c.b16 %v750, %v750
  %v814 = vpack.c.b16 %v751, %v751
  %v815 = vpack.c.b16 %v752, %v752
  %v816 = vpack.c.b16 %v753, %v753
  %v817 = vpack.c.b16 %v754, %v754
  %v818 = vpack.c.b16 %v755, %v755
  %v819 = vpack.c.b16 %v756, %v756
  %v820 = vpack.c.b16 %v757, %v757
  %v821 = vpack.c.b16 %v758, %v758
  %v822 = vpack.c.b16 %v759, %v759
  %v823 = vpack.c.b16 %v760, %v760
  %v824 = vpack.c.b16 %v761, %v761
  %v825 = vpack.c.b16 %v762, %v762
  %v826 = vpack.c.b16 %v763, %v763
  %v827 = vpack.c.b16 %v764, %v764
  %v828 = vpack.c.b16 %v765, %v765
  %vm892 = vcmask 257024
  %893 = vst.msk [vmem:[%s3] sm:$0xf] %vm892, %v766
  %894 = vst.msk [vmem:[%s3 + $0x4] sm:$0xf] %vm892, %v767
  %895 = vst.msk [vmem:[%s3 + $0x8] sm:$0xf] %vm892, %v768
  %896 = vst.msk [vmem:[%s3 + $0xc] sm:$0xf] %vm892, %v769
  %897 = vst.msk [vmem:[%s3 + $0x10] sm:$0xf] %vm892, %v770
  %898 = vst.msk [vmem:[%s3 + $0x14] sm:$0xf] %vm892, %v771
  %899 = vst.msk [vmem:[%s3 + $0x18] sm:$0xf] %vm892, %v772
  %900 = vst.msk [vmem:[%s3 + $0x1c] sm:$0xf] %vm892, %v773
  %901 = vst.msk [vmem:[%s3 + $0x20] sm:$0xf] %vm892, %v774
  %902 = vst.msk [vmem:[%s3 + $0x24] sm:$0xf] %vm892, %v775
  %903 = vst.msk [vmem:[%s3 + $0x28] sm:$0xf] %vm892, %v776
  %904 = vst.msk [vmem:[%s3 + $0x2c] sm:$0xf] %vm892, %v777
  %905 = vst.msk [vmem:[%s3 + $0x30] sm:$0xf] %vm892, %v778
  %906 = vst.msk [vmem:[%s3 + $0x34] sm:$0xf] %vm892, %v779
  %907 = vst.msk [vmem:[%s3 + $0x38] sm:$0xf] %vm892, %v780
  %908 = vst.msk [vmem:[%s3 + $0x3c] sm:$0xf] %vm892, %v781
  %909 = vst.msk [vmem:[%s3 + $0x40] sm:$0xf] %vm892, %v782
  %910 = vst.msk [vmem:[%s3 + $0x44] sm:$0xf] %vm892, %v783
  %911 = vst.msk [vmem:[%s3 + $0x48] sm:$0xf] %vm892, %v784
  %912 = vst.msk [vmem:[%s3 + $0x4c] sm:$0xf] %vm892, %v785
  %913 = vst.msk [vmem:[%s3 + $0x50] sm:$0xf] %vm892, %v786
  %914 = vst.msk [vmem:[%s3 + $0x54] sm:$0xf] %vm892, %v787
  %915 = vst.msk [vmem:[%s3 + $0x58] sm:$0xf] %vm892, %v788
  %916 = vst.msk [vmem:[%s3 + $0x5c] sm:$0xf] %vm892, %v789
  %917 = vst.msk [vmem:[%s3 + $0x60] sm:$0xf] %vm892, %v790
  %918 = vst.msk [vmem:[%s3 + $0x64] sm:$0xf] %vm892, %v791
  %919 = vst.msk [vmem:[%s3 + $0x68] sm:$0xf] %vm892, %v792
  %920 = vst.msk [vmem:[%s3 + $0x6c] sm:$0xf] %vm892, %v793
  %921 = vst.msk [vmem:[%s3 + $0x70] sm:$0xf] %vm892, %v794
  %922 = vst.msk [vmem:[%s3 + $0x74] sm:$0xf] %vm892, %v795
  %923 = vst.msk [vmem:[%s3 + $0x78] sm:$0xf] %vm892, %v796
  %924 = vst.msk [vmem:[%s3 + $0x7c] sm:$0xf] %vm892, %v797
  %925 = vst.msk [vmem:[%s3 + $0x80] sm:$0xf] %vm892, %v798
  %926 = vst.msk [vmem:[%s3 + $0x84] sm:$0xf] %vm892, %v799
  %927 = vst.msk [vmem:[%s3 + $0x88] sm:$0xf] %vm892, %v800
  %928 = vst.msk [vmem:[%s3 + $0x8c] sm:$0xf] %vm892, %v801
  %929 = vst.msk [vmem:[%s3 + $0x90] sm:$0xf] %vm892, %v802
  %930 = vst.msk [vmem:[%s3 + $0x94] sm:$0xf] %vm892, %v803
  %931 = vst.msk [vmem:[%s3 + $0x98] sm:$0xf] %vm892, %v804
  %932 = vst.msk [vmem:[%s3 + $0x9c] sm:$0xf] %vm892, %v805
  %933 = vst.msk [vmem:[%s3 + $0xa0] sm:$0xf] %vm892, %v806
  %934 = vst.msk [vmem:[%s3 + $0xa4] sm:$0xf] %vm892, %v807
  %935 = vst.msk [vmem:[%s3 + $0xa8] sm:$0xf] %vm892, %v808
  %936 = vst.msk [vmem:[%s3 + $0xac] sm:$0xf] %vm892, %v809
  %937 = vst.msk [vmem:[%s3 + $0xb0] sm:$0xf] %vm892, %v810
  %938 = vst.msk [vmem:[%s3 + $0xb4] sm:$0xf] %vm892, %v811
  %939 = vst.msk [vmem:[%s3 + $0xb8] sm:$0xf] %vm892, %v812
  %940 = vst.msk [vmem:[%s3 + $0xbc] sm:$0xf] %vm892, %v813
  %941 = vst.msk [vmem:[%s3 + $0xc0] sm:$0xf] %vm892, %v814
  %942 = vst.msk [vmem:[%s3 + $0xc4] sm:$0xf] %vm892, %v815
  %943 = vst.msk [vmem:[%s3 + $0xc8] sm:$0xf] %vm892, %v816
  %944 = vst.msk [vmem:[%s3 + $0xcc] sm:$0xf] %vm892, %v817
  %945 = vst.msk [vmem:[%s3 + $0xd0] sm:$0xf] %vm892, %v818
  %946 = vst.msk [vmem:[%s3 + $0xd4] sm:$0xf] %vm892, %v819
  %947 = vst.msk [vmem:[%s3 + $0xd8] sm:$0xf] %vm892, %v820
  %948 = vst.msk [vmem:[%s3 + $0xdc] sm:$0xf] %vm892, %v821
  %949 = vst.msk [vmem:[%s3 + $0xe0] sm:$0xf] %vm892, %v822
  %950 = vst.msk [vmem:[%s3 + $0xe4] sm:$0xf] %vm892, %v823
  %951 = vst.msk [vmem:[%s3 + $0xe8] sm:$0xf] %vm892, %v824
  %952 = vst.msk [vmem:[%s3 + $0xec] sm:$0xf] %vm892, %v825
  %953 = vst.msk [vmem:[%s3 + $0xf0] sm:$0xf] %vm892, %v826
  %954 = vst.msk [vmem:[%s3 + $0xf4] sm:$0xf] %vm892, %v827
  %955 = vst.msk [vmem:[%s3 + $0xf8] sm:$0xf] %vm892, %v828
  %v956 = vld [vmem:[%s2] sm:$0xf]
  %v957 = vld [vmem:[%s2 + $0x4] sm:$0xf]
  %v958 = vld [vmem:[%s2 + $0x8] sm:$0xf]
  %v959 = vld [vmem:[%s2 + $0xc] sm:$0xf]
  %v964 = vunpack.c.l.b16 %v956
  %v965 = vunpack.c.l.b16 %v957
  %v966 = vunpack.c.l.b16 %v958
  %v967 = vunpack.c.l.b16 %v959
  %v968 = vpack.c.b16 %v965, %v964
  %v969 = vpack.c.b16 %v967, %v966
  %972 = vmatprep.subr.bf16.mxu0 0
  %973 = vmatpush1.bf16.msra.mxu0 0
  %974 = vmatprep.subr.bf16.mxu0 0
  %975 = vmatpush1.bf16.msra.mxu0 0
  %976 = vmatprep.subr.bf16.mxu0 0
  %977 = vmatpush1.bf16.msra.mxu0 0
  %978 = vmatprep.subr.bf16.mxu0 0
  %979 = vmatpush1.bf16.msra.mxu0 0
  %980 = vmatprep.subr.bf16.mxu0 0
  %981 = vmatpush1.bf16.msra.mxu0 0
  %982 = vmatprep.subr.bf16.mxu0 0
  %983 = vmatpush1.bf16.msra.mxu0 0
  %984 = vmatprep.subr.bf16.mxu0 0
  %985 = vmatpush1.bf16.msra.mxu0 %v969
  %986 = vmatprep.subr.bf16.mxu0 0
  %987 = vmatpush1.bf16.msra.mxu0 %v968
  %988 = vmatprep.subr.bf16.mxu0 0
  %989 = vmatpush2.bf16.msra.mxu0 0
  %990 = vmatprep.subr.bf16.mxu0 0
  %991 = vmatpush2.bf16.msra.mxu0 0
  %992 = vmatprep.subr.bf16.mxu0 0
  %993 = vmatpush2.bf16.msra.mxu0 0
  %994 = vmatprep.subr.bf16.mxu0 0
  %995 = vmatpush2.bf16.msra.mxu0 0
  %996 = vmatprep.subr.bf16.mxu0 0
  %997 = vmatpush2.bf16.msra.mxu0 0
  %998 = vmatprep.subr.bf16.mxu0 0
  %999 = vmatpush2.bf16.msra.mxu0 0
  %1000 = vmatprep.subr.bf16.mxu0 0
  %1001 = vmatpush2.bf16.msra.mxu0 0
  %1002 = vmatprep.subr.bf16.mxu0 0
  %1003 = vmatpush2.bf16.msra.mxu0 0
  %1004 = vmatprep.mubr.bf16.mxu0 0
  %1005 = vmatmul.mubr.bf16.gmra.mxu0 %v256
  %v1006 = vpop.f32.mrf.mxu0
  %v1007 = vadd.f32 0.0, %v1006
  %v1008 = vpop.f32.mrf.mxu0
  %v1009 = vpop.f32.mrf.mxu0
  %v1010 = vadd.f32 0.0, %v1009
  %v1011 = vpop.f32.mrf.mxu0
  %1012 = vmatprep.mubr.bf16.mxu0 0
  %1013 = vmatmul.mubr.bf16.gmra.mxu0 %v259
  %v1014 = vpop.f32.mrf.mxu0
  %v1015 = vadd.f32 0.0, %v1014
  %v1016 = vpop.f32.mrf.mxu0
  %v1017 = vpop.f32.mrf.mxu0
  %v1018 = vadd.f32 0.0, %v1017
  %v1019 = vpop.f32.mrf.mxu0
  %1020 = vmatprep.mubr.bf16.mxu0 0
  %1021 = vmatmul.mubr.bf16.gmra.mxu0 %v262
  %v1022 = vpop.f32.mrf.mxu0
  %v1023 = vadd.f32 0.0, %v1022
  %v1024 = vpop.f32.mrf.mxu0
  %v1025 = vpop.f32.mrf.mxu0
  %v1026 = vadd.f32 0.0, %v1025
  %v1027 = vpop.f32.mrf.mxu0
  %1028 = vmatprep.mubr.bf16.mxu0 0
  %1029 = vmatmul.mubr.bf16.gmra.mxu0 %v265
  %v1030 = vpop.f32.mrf.mxu0
  %v1031 = vadd.f32 0.0, %v1030
  %v1032 = vpop.f32.mrf.mxu0
  %v1033 = vpop.f32.mrf.mxu0
  %v1034 = vadd.f32 0.0, %v1033
  %v1035 = vpop.f32.mrf.mxu0
  %1036 = vmatprep.mubr.bf16.mxu0 0
  %1037 = vmatmul.mubr.bf16.gmra.mxu0 %v268
  %v1038 = vpop.f32.mrf.mxu0
  %v1039 = vadd.f32 0.0, %v1038
  %v1040 = vpop.f32.mrf.mxu0
  %v1041 = vpop.f32.mrf.mxu0
  %v1042 = vadd.f32 0.0, %v1041
  %v1043 = vpop.f32.mrf.mxu0
  %1044 = vmatprep.mubr.bf16.mxu0 0
  %1045 = vmatmul.mubr.bf16.gmra.mxu0 %v271
  %v1046 = vpop.f32.mrf.mxu0
  %v1047 = vadd.f32 0.0, %v1046
  %v1048 = vpop.f32.mrf.mxu0
  %v1049 = vpop.f32.mrf.mxu0
  %v1050 = vadd.f32 0.0, %v1049
  %v1051 = vpop.f32.mrf.mxu0
  %1052 = vmatprep.mubr.bf16.mxu0 0
  %1053 = vmatmul.mubr.bf16.gmra.mxu0 %v274
  %v1054 = vpop.f32.mrf.mxu0
  %v1055 = vadd.f32 0.0, %v1054
  %v1056 = vpop.f32.mrf.mxu0
  %v1057 = vpop.f32.mrf.mxu0
  %v1058 = vadd.f32 0.0, %v1057
  %v1059 = vpop.f32.mrf.mxu0
  %1060 = vmatprep.mubr.bf16.mxu0 0
  %1061 = vmatmul.mubr.bf16.gmra.mxu0 %v277
  %v1062 = vpop.f32.mrf.mxu0
  %v1063 = vadd.f32 0.0, %v1062
  %v1064 = vpop.f32.mrf.mxu0
  %v1065 = vpop.f32.mrf.mxu0
  %v1066 = vadd.f32 0.0, %v1065
  %v1067 = vpop.f32.mrf.mxu0
  %1068 = vmatprep.mubr.bf16.mxu0 0
  %1069 = vmatmul.mubr.bf16.gmra.mxu0 %v280
  %v1070 = vpop.f32.mrf.mxu0
  %v1071 = vadd.f32 0.0, %v1070
  %v1072 = vpop.f32.mrf.mxu0
  %v1073 = vpop.f32.mrf.mxu0
  %v1074 = vadd.f32 0.0, %v1073
  %v1075 = vpop.f32.mrf.mxu0
  %1076 = vmatprep.mubr.bf16.mxu0 0
  %1077 = vmatmul.mubr.bf16.gmra.mxu0 %v283
  %v1078 = vpop.f32.mrf.mxu0
  %v1079 = vadd.f32 0.0, %v1078
  %v1080 = vpop.f32.mrf.mxu0
  %v1081 = vpop.f32.mrf.mxu0
  %v1082 = vadd.f32 0.0, %v1081
  %v1083 = vpop.f32.mrf.mxu0
  %1084 = vmatprep.mubr.bf16.mxu0 0
  %1085 = vmatmul.mubr.bf16.gmra.mxu0 %v286
  %v1086 = vpop.f32.mrf.mxu0
  %v1087 = vadd.f32 0.0, %v1086
  %v1088 = vpop.f32.mrf.mxu0
  %v1089 = vpop.f32.mrf.mxu0
  %v1090 = vadd.f32 0.0, %v1089
  %v1091 = vpop.f32.mrf.mxu0
  %1092 = vmatprep.mubr.bf16.mxu0 0
  %1093 = vmatmul.mubr.bf16.gmra.mxu0 %v289
  %v1094 = vpop.f32.mrf.mxu0
  %v1095 = vadd.f32 0.0, %v1094
  %v1096 = vpop.f32.mrf.mxu0
  %v1097 = vpop.f32.mrf.mxu0
  %v1098 = vadd.f32 0.0, %v1097
  %v1099 = vpop.f32.mrf.mxu0
  %1100 = vmatprep.mubr.bf16.mxu0 0
  %1101 = vmatmul.mubr.bf16.gmra.mxu0 %v292
  %v1102 = vpop.f32.mrf.mxu0
  %v1103 = vadd.f32 0.0, %v1102
  %v1104 = vpop.f32.mrf.mxu0
  %v1105 = vpop.f32.mrf.mxu0
  %v1106 = vadd.f32 0.0, %v1105
  %v1107 = vpop.f32.mrf.mxu0
  %1108 = vmatprep.mubr.bf16.mxu0 0
  %1109 = vmatmul.mubr.bf16.gmra.mxu0 %v295
  %v1110 = vpop.f32.mrf.mxu0
  %v1111 = vadd.f32 0.0, %v1110
  %v1112 = vpop.f32.mrf.mxu0
  %v1113 = vpop.f32.mrf.mxu0
  %v1114 = vadd.f32 0.0, %v1113
  %v1115 = vpop.f32.mrf.mxu0
  %1116 = vmatprep.mubr.bf16.mxu0 0
  %1117 = vmatmul.mubr.bf16.gmra.mxu0 %v298
  %v1118 = vpop.f32.mrf.mxu0
  %v1119 = vadd.f32 0.0, %v1118
  %v1120 = vpop.f32.mrf.mxu0
  %v1121 = vpop.f32.mrf.mxu0
  %v1122 = vadd.f32 0.0, %v1121
  %v1123 = vpop.f32.mrf.mxu0
  %1124 = vmatprep.mubr.bf16.mxu0 0
  %1125 = vmatmul.mubr.bf16.gmra.mxu0 %v301
  %v1126 = vpop.f32.mrf.mxu0
  %v1127 = vadd.f32 0.0, %v1126
  %v1128 = vpop.f32.mrf.mxu0
  %v1129 = vpop.f32.mrf.mxu0
  %v1130 = vadd.f32 0.0, %v1129
  %v1131 = vpop.f32.mrf.mxu0
  %1132 = vmatprep.mubr.bf16.mxu0 0
  %1133 = vmatmul.mubr.bf16.gmra.mxu0 %v304
  %v1134 = vpop.f32.mrf.mxu0
  %v1135 = vadd.f32 0.0, %v1134
  %v1136 = vpop.f32.mrf.mxu0
  %v1137 = vpop.f32.mrf.mxu0
  %v1138 = vadd.f32 0.0, %v1137
  %v1139 = vpop.f32.mrf.mxu0
  %1140 = vmatprep.mubr.bf16.mxu0 0
  %1141 = vmatmul.mubr.bf16.gmra.mxu0 %v307
  %v1142 = vpop.f32.mrf.mxu0
  %v1143 = vadd.f32 0.0, %v1142
  %v1144 = vpop.f32.mrf.mxu0
  %v1145 = vpop.f32.mrf.mxu0
  %v1146 = vadd.f32 0.0, %v1145
  %v1147 = vpop.f32.mrf.mxu0
  %1148 = vmatprep.mubr.bf16.mxu0 0
  %1149 = vmatmul.mubr.bf16.gmra.mxu0 %v310
  %v1150 = vpop.f32.mrf.mxu0
  %v1151 = vadd.f32 0.0, %v1150
  %v1152 = vpop.f32.mrf.mxu0
  %v1153 = vpop.f32.mrf.mxu0
  %v1154 = vadd.f32 0.0, %v1153
  %v1155 = vpop.f32.mrf.mxu0
  %1156 = vmatprep.mubr.bf16.mxu0 0
  %1157 = vmatmul.mubr.bf16.gmra.mxu0 %v313
  %v1158 = vpop.f32.mrf.mxu0
  %v1159 = vadd.f32 0.0, %v1158
  %v1160 = vpop.f32.mrf.mxu0
  %v1161 = vpop.f32.mrf.mxu0
  %v1162 = vadd.f32 0.0, %v1161
  %v1163 = vpop.f32.mrf.mxu0
  %1164 = vmatprep.mubr.bf16.mxu0 0
  %1165 = vmatmul.mubr.bf16.gmra.mxu0 %v316
  %v1166 = vpop.f32.mrf.mxu0
  %v1167 = vadd.f32 0.0, %v1166
  %v1168 = vpop.f32.mrf.mxu0
  %v1169 = vpop.f32.mrf.mxu0
  %v1170 = vadd.f32 0.0, %v1169
  %v1171 = vpop.f32.mrf.mxu0
  %1172 = vmatprep.mubr.bf16.mxu0 0
  %1173 = vmatmul.mubr.bf16.gmra.mxu0 %v319
  %v1174 = vpop.f32.mrf.mxu0
  %v1175 = vadd.f32 0.0, %v1174
  %v1176 = vpop.f32.mrf.mxu0
  %v1177 = vpop.f32.mrf.mxu0
  %v1178 = vadd.f32 0.0, %v1177
  %v1179 = vpop.f32.mrf.mxu0
  %1180 = vmatprep.mubr.bf16.mxu0 0
  %1181 = vmatmul.mubr.bf16.gmra.mxu0 %v322
  %v1182 = vpop.f32.mrf.mxu0
  %v1183 = vadd.f32 0.0, %v1182
  %v1184 = vpop.f32.mrf.mxu0
  %v1185 = vpop.f32.mrf.mxu0
  %v1186 = vadd.f32 0.0, %v1185
  %v1187 = vpop.f32.mrf.mxu0
  %1188 = vmatprep.mubr.bf16.mxu0 0
  %1189 = vmatmul.mubr.bf16.gmra.mxu0 %v325
  %v1190 = vpop.f32.mrf.mxu0
  %v1191 = vadd.f32 0.0, %v1190
  %v1192 = vpop.f32.mrf.mxu0
  %v1193 = vpop.f32.mrf.mxu0
  %v1194 = vadd.f32 0.0, %v1193
  %v1195 = vpop.f32.mrf.mxu0
  %1196 = vmatprep.mubr.bf16.mxu0 0
  %1197 = vmatmul.mubr.bf16.gmra.mxu0 %v328
  %v1198 = vpop.f32.mrf.mxu0
  %v1199 = vadd.f32 0.0, %v1198
  %v1200 = vpop.f32.mrf.mxu0
  %v1201 = vpop.f32.mrf.mxu0
  %v1202 = vadd.f32 0.0, %v1201
  %v1203 = vpop.f32.mrf.mxu0
  %1204 = vmatprep.mubr.bf16.mxu0 0
  %1205 = vmatmul.mubr.bf16.gmra.mxu0 %v331
  %v1206 = vpop.f32.mrf.mxu0
  %v1207 = vadd.f32 0.0, %v1206
  %v1208 = vpop.f32.mrf.mxu0
  %v1209 = vpop.f32.mrf.mxu0
  %v1210 = vadd.f32 0.0, %v1209
  %v1211 = vpop.f32.mrf.mxu0
  %1212 = vmatprep.mubr.bf16.mxu0 0
  %1213 = vmatmul.mubr.bf16.gmra.mxu0 %v334
  %v1214 = vpop.f32.mrf.mxu0
  %v1215 = vadd.f32 0.0, %v1214
  %v1216 = vpop.f32.mrf.mxu0
  %v1217 = vpop.f32.mrf.mxu0
  %v1218 = vadd.f32 0.0, %v1217
  %v1219 = vpop.f32.mrf.mxu0
  %1220 = vmatprep.mubr.bf16.mxu0 0
  %1221 = vmatmul.mubr.bf16.gmra.mxu0 %v337
  %v1222 = vpop.f32.mrf.mxu0
  %v1223 = vadd.f32 0.0, %v1222
  %v1224 = vpop.f32.mrf.mxu0
  %v1225 = vpop.f32.mrf.mxu0
  %v1226 = vadd.f32 0.0, %v1225
  %v1227 = vpop.f32.mrf.mxu0
  %1228 = vmatprep.mubr.bf16.mxu0 0
  %1229 = vmatmul.mubr.bf16.gmra.mxu0 %v340
  %v1230 = vpop.f32.mrf.mxu0
  %v1231 = vadd.f32 0.0, %v1230
  %v1232 = vpop.f32.mrf.mxu0
  %v1233 = vpop.f32.mrf.mxu0
  %v1234 = vadd.f32 0.0, %v1233
  %v1235 = vpop.f32.mrf.mxu0
  %1236 = vmatprep.mubr.bf16.mxu0 0
  %1237 = vmatmul.mubr.bf16.gmra.mxu0 %v343
  %v1238 = vpop.f32.mrf.mxu0
  %v1239 = vadd.f32 0.0, %v1238
  %v1240 = vpop.f32.mrf.mxu0
  %v1241 = vpop.f32.mrf.mxu0
  %v1242 = vadd.f32 0.0, %v1241
  %v1243 = vpop.f32.mrf.mxu0
  %1244 = vmatprep.mubr.bf16.mxu0 0
  %1245 = vmatmul.mubr.bf16.gmra.mxu0 %v346
  %v1246 = vpop.f32.mrf.mxu0
  %v1247 = vadd.f32 0.0, %v1246
  %v1248 = vpop.f32.mrf.mxu0
  %v1249 = vpop.f32.mrf.mxu0
  %v1250 = vadd.f32 0.0, %v1249
  %v1251 = vpop.f32.mrf.mxu0
  %1252 = vmatprep.mubr.bf16.mxu0 0
  %1253 = vmatmul.mubr.bf16.gmra.mxu0 %v349
  %v1254 = vpop.f32.mrf.mxu0
  %v1255 = vadd.f32 0.0, %v1254
  %v1256 = vpop.f32.mrf.mxu0
  %v1257 = vpop.f32.mrf.mxu0
  %v1258 = vpop.f32.mrf.mxu0
  %1259 = vdwg.mxu0
  %v1260 = vpack.c.bf16 %v1010, %v1007
  %v1261 = vpack.c.bf16 %v1018, %v1015
  %v1262 = vpack.c.bf16 %v1026, %v1023
  %v1263 = vpack.c.bf16 %v1034, %v1031
  %v1264 = vpack.c.bf16 %v1042, %v1039
  %v1265 = vpack.c.bf16 %v1050, %v1047
  %v1266 = vpack.c.bf16 %v1058, %v1055
  %v1267 = vpack.c.bf16 %v1066, %v1063
  %v1268 = vpack.c.bf16 %v1074, %v1071
  %v1269 = vpack.c.bf16 %v1082, %v1079
  %v1270 = vpack.c.bf16 %v1090, %v1087
  %v1271 = vpack.c.bf16 %v1098, %v1095
  %v1272 = vpack.c.bf16 %v1106, %v1103
  %v1273 = vpack.c.bf16 %v1114, %v1111
  %v1274 = vpack.c.bf16 %v1122, %v1119
  %v1275 = vpack.c.bf16 %v1130, %v1127
  %v1276 = vpack.c.bf16 %v1138, %v1135
  %v1277 = vpack.c.bf16 %v1146, %v1143
  %v1278 = vpack.c.bf16 %v1154, %v1151
  %v1279 = vpack.c.bf16 %v1162, %v1159
  %v1280 = vpack.c.bf16 %v1170, %v1167
  %v1281 = vpack.c.bf16 %v1178, %v1175
  %v1282 = vpack.c.bf16 %v1186, %v1183
  %v1283 = vpack.c.bf16 %v1194, %v1191
  %v1284 = vpack.c.bf16 %v1202, %v1199
  %v1285 = vpack.c.bf16 %v1210, %v1207
  %v1286 = vpack.c.bf16 %v1218, %v1215
  %v1287 = vpack.c.bf16 %v1226, %v1223
  %v1288 = vpack.c.bf16 %v1234, %v1231
  %v1289 = vpack.c.bf16 %v1242, %v1239
  %v1290 = vpack.c.bf16 %v1250, %v1247
  %v1291 = vpack.c.bf16 %v1255, %v1255
  %v1324 = vunpack.c.l.b16 %v1260
  %v1325 = vunpack.c.h.b16 %v1260
  %v1326 = vunpack.c.l.b16 %v1261
  %v1327 = vunpack.c.h.b16 %v1261
  %v1328 = vunpack.c.l.b16 %v1262
  %v1329 = vunpack.c.h.b16 %v1262
  %v1330 = vunpack.c.l.b16 %v1263
  %v1331 = vunpack.c.h.b16 %v1263
  %v1332 = vunpack.c.l.b16 %v1264
  %v1333 = vunpack.c.h.b16 %v1264
  %v1334 = vunpack.c.l.b16 %v1265
  %v1335 = vunpack.c.h.b16 %v1265
  %v1336 = vunpack.c.l.b16 %v1266
  %v1337 = vunpack.c.h.b16 %v1266
  %v1338 = vunpack.c.l.b16 %v1267
  %v1339 = vunpack.c.h.b16 %v1267
  %v1340 = vunpack.c.l.b16 %v1268
  %v1341 = vunpack.c.h.b16 %v1268
  %v1342 = vunpack.c.l.b16 %v1269
  %v1343 = vunpack.c.h.b16 %v1269
  %v1344 = vunpack.c.l.b16 %v1270
  %v1345 = vunpack.c.h.b16 %v1270
  %v1346 = vunpack.c.l.b16 %v1271
  %v1347 = vunpack.c.h.b16 %v1271
  %v1348 = vunpack.c.l.b16 %v1272
  %v1349 = vunpack.c.h.b16 %v1272
  %v1350 = vunpack.c.l.b16 %v1273
  %v1351 = vunpack.c.h.b16 %v1273
  %v1352 = vunpack.c.l.b16 %v1274
  %v1353 = vunpack.c.h.b16 %v1274
  %v1354 = vunpack.c.l.b16 %v1275
  %v1355 = vunpack.c.h.b16 %v1275
  %v1356 = vunpack.c.l.b16 %v1276
  %v1357 = vunpack.c.h.b16 %v1276
  %v1358 = vunpack.c.l.b16 %v1277
  %v1359 = vunpack.c.h.b16 %v1277
  %v1360 = vunpack.c.l.b16 %v1278
  %v1361 = vunpack.c.h.b16 %v1278
  %v1362 = vunpack.c.l.b16 %v1279
  %v1363 = vunpack.c.h.b16 %v1279
  %v1364 = vunpack.c.l.b16 %v1280
  %v1365 = vunpack.c.h.b16 %v1280
  %v1366 = vunpack.c.l.b16 %v1281
  %v1367 = vunpack.c.h.b16 %v1281
  %v1368 = vunpack.c.l.b16 %v1282
  %v1369 = vunpack.c.h.b16 %v1282
  %v1370 = vunpack.c.l.b16 %v1283
  %v1371 = vunpack.c.h.b16 %v1283
  %v1372 = vunpack.c.l.b16 %v1284
  %v1373 = vunpack.c.h.b16 %v1284
  %v1374 = vunpack.c.l.b16 %v1285
  %v1375 = vunpack.c.h.b16 %v1285
  %v1376 = vunpack.c.l.b16 %v1286
  %v1377 = vunpack.c.h.b16 %v1286
  %v1378 = vunpack.c.l.b16 %v1287
  %v1379 = vunpack.c.h.b16 %v1287
  %v1380 = vunpack.c.l.b16 %v1288
  %v1381 = vunpack.c.h.b16 %v1288
  %v1382 = vunpack.c.l.b16 %v1289
  %v1383 = vunpack.c.h.b16 %v1289
  %v1384 = vunpack.c.l.b16 %v1290
  %v1385 = vunpack.c.h.b16 %v1290
  %v1386 = vunpack.c.l.b16 %v1291
  %v1387 = vpack.c.b16 %v1324, %v1324
  %v1388 = vpack.c.b16 %v1325, %v1325
  %v1389 = vpack.c.b16 %v1326, %v1326
  %v1390 = vpack.c.b16 %v1327, %v1327
  %v1391 = vpack.c.b16 %v1328, %v1328
  %v1392 = vpack.c.b16 %v1329, %v1329
  %v1393 = vpack.c.b16 %v1330, %v1330
  %v1394 = vpack.c.b16 %v1331, %v1331
  %v1395 = vpack.c.b16 %v1332, %v1332
  %v1396 = vpack.c.b16 %v1333, %v1333
  %v1397 = vpack.c.b16 %v1334, %v1334
  %v1398 = vpack.c.b16 %v1335, %v1335
  %v1399 = vpack.c.b16 %v1336, %v1336
  %v1400 = vpack.c.b16 %v1337, %v1337
  %v1401 = vpack.c.b16 %v1338, %v1338
  %v1402 = vpack.c.b16 %v1339, %v1339
  %v1403 = vpack.c.b16 %v1340, %v1340
  %v1404 = vpack.c.b16 %v1341, %v1341
  %v1405 = vpack.c.b16 %v1342, %v1342
  %v1406 = vpack.c.b16 %v1343, %v1343
  %v1407 = vpack.c.b16 %v1344, %v1344
  %v1408 = vpack.c.b16 %v1345, %v1345
  %v1409 = vpack.c.b16 %v1346, %v1346
  %v1410 = vpack.c.b16 %v1347, %v1347
  %v1411 = vpack.c.b16 %v1348, %v1348
  %v1412 = vpack.c.b16 %v1349, %v1349
  %v1413 = vpack.c.b16 %v1350, %v1350
  %v1414 = vpack.c.b16 %v1351, %v1351
  %v1415 = vpack.c.b16 %v1352, %v1352
  %v1416 = vpack.c.b16 %v1353, %v1353
  %v1417 = vpack.c.b16 %v1354, %v1354
  %v1418 = vpack.c.b16 %v1355, %v1355
  %v1419 = vpack.c.b16 %v1356, %v1356
  %v1420 = vpack.c.b16 %v1357, %v1357
  %v1421 = vpack.c.b16 %v1358, %v1358
  %v1422 = vpack.c.b16 %v1359, %v1359
  %v1423 = vpack.c.b16 %v1360, %v1360
  %v1424 = vpack.c.b16 %v1361, %v1361
  %v1425 = vpack.c.b16 %v1362, %v1362
  %v1426 = vpack.c.b16 %v1363, %v1363
  %v1427 = vpack.c.b16 %v1364, %v1364
  %v1428 = vpack.c.b16 %v1365, %v1365
  %v1429 = vpack.c.b16 %v1366, %v1366
  %v1430 = vpack.c.b16 %v1367, %v1367
  %v1431 = vpack.c.b16 %v1368, %v1368
  %v1432 = vpack.c.b16 %v1369, %v1369
  %v1433 = vpack.c.b16 %v1370, %v1370
  %v1434 = vpack.c.b16 %v1371, %v1371
  %v1435 = vpack.c.b16 %v1372, %v1372
  %v1436 = vpack.c.b16 %v1373, %v1373
  %v1437 = vpack.c.b16 %v1374, %v1374
  %v1438 = vpack.c.b16 %v1375, %v1375
  %v1439 = vpack.c.b16 %v1376, %v1376
  %v1440 = vpack.c.b16 %v1377, %v1377
  %v1441 = vpack.c.b16 %v1378, %v1378
  %v1442 = vpack.c.b16 %v1379, %v1379
  %v1443 = vpack.c.b16 %v1380, %v1380
  %v1444 = vpack.c.b16 %v1381, %v1381
  %v1445 = vpack.c.b16 %v1382, %v1382
  %v1446 = vpack.c.b16 %v1383, %v1383
  %v1447 = vpack.c.b16 %v1384, %v1384
  %v1448 = vpack.c.b16 %v1385, %v1385
  %v1449 = vpack.c.b16 %v1386, %v1386
  %1513 = vst.msk [vmem:[%s4] sm:$0xf] %vm892, %v1387
  %1514 = vst.msk [vmem:[%s4 + $0x4] sm:$0xf] %vm892, %v1388
  %1515 = vst.msk [vmem:[%s4 + $0x8] sm:$0xf] %vm892, %v1389
  %1516 = vst.msk [vmem:[%s4 + $0xc] sm:$0xf] %vm892, %v1390
  %1517 = vst.msk [vmem:[%s4 + $0x10] sm:$0xf] %vm892, %v1391
  %1518 = vst.msk [vmem:[%s4 + $0x14] sm:$0xf] %vm892, %v1392
  %1519 = vst.msk [vmem:[%s4 + $0x18] sm:$0xf] %vm892, %v1393
  %1520 = vst.msk [vmem:[%s4 + $0x1c] sm:$0xf] %vm892, %v1394
  %1521 = vst.msk [vmem:[%s4 + $0x20] sm:$0xf] %vm892, %v1395
  %1522 = vst.msk [vmem:[%s4 + $0x24] sm:$0xf] %vm892, %v1396
  %1523 = vst.msk [vmem:[%s4 + $0x28] sm:$0xf] %vm892, %v1397
  %1524 = vst.msk [vmem:[%s4 + $0x2c] sm:$0xf] %vm892, %v1398
  %1525 = vst.msk [vmem:[%s4 + $0x30] sm:$0xf] %vm892, %v1399
  %1526 = vst.msk [vmem:[%s4 + $0x34] sm:$0xf] %vm892, %v1400
  %1527 = vst.msk [vmem:[%s4 + $0x38] sm:$0xf] %vm892, %v1401
  %1528 = vst.msk [vmem:[%s4 + $0x3c] sm:$0xf] %vm892, %v1402
  %1529 = vst.msk [vmem:[%s4 + $0x40] sm:$0xf] %vm892, %v1403
  %1530 = vst.msk [vmem:[%s4 + $0x44] sm:$0xf] %vm892, %v1404
  %1531 = vst.msk [vmem:[%s4 + $0x48] sm:$0xf] %vm892, %v1405
  %1532 = vst.msk [vmem:[%s4 + $0x4c] sm:$0xf] %vm892, %v1406
  %1533 = vst.msk [vmem:[%s4 + $0x50] sm:$0xf] %vm892, %v1407
  %1534 = vst.msk [vmem:[%s4 + $0x54] sm:$0xf] %vm892, %v1408
  %1535 = vst.msk [vmem:[%s4 + $0x58] sm:$0xf] %vm892, %v1409
  %1536 = vst.msk [vmem:[%s4 + $0x5c] sm:$0xf] %vm892, %v1410
  %1537 = vst.msk [vmem:[%s4 + $0x60] sm:$0xf] %vm892, %v1411
  %1538 = vst.msk [vmem:[%s4 + $0x64] sm:$0xf] %vm892, %v1412
  %1539 = vst.msk [vmem:[%s4 + $0x68] sm:$0xf] %vm892, %v1413
  %1540 = vst.msk [vmem:[%s4 + $0x6c] sm:$0xf] %vm892, %v1414
  %1541 = vst.msk [vmem:[%s4 + $0x70] sm:$0xf] %vm892, %v1415
  %1542 = vst.msk [vmem:[%s4 + $0x74] sm:$0xf] %vm892, %v1416
  %1543 = vst.msk [vmem:[%s4 + $0x78] sm:$0xf] %vm892, %v1417
  %1544 = vst.msk [vmem:[%s4 + $0x7c] sm:$0xf] %vm892, %v1418
  %1545 = vst.msk [vmem:[%s4 + $0x80] sm:$0xf] %vm892, %v1419
  %1546 = vst.msk [vmem:[%s4 + $0x84] sm:$0xf] %vm892, %v1420
  %1547 = vst.msk [vmem:[%s4 + $0x88] sm:$0xf] %vm892, %v1421
  %1548 = vst.msk [vmem:[%s4 + $0x8c] sm:$0xf] %vm892, %v1422
  %1549 = vst.msk [vmem:[%s4 + $0x90] sm:$0xf] %vm892, %v1423
  %1550 = vst.msk [vmem:[%s4 + $0x94] sm:$0xf] %vm892, %v1424
  %1551 = vst.msk [vmem:[%s4 + $0x98] sm:$0xf] %vm892, %v1425
  %1552 = vst.msk [vmem:[%s4 + $0x9c] sm:$0xf] %vm892, %v1426
  %1553 = vst.msk [vmem:[%s4 + $0xa0] sm:$0xf] %vm892, %v1427
  %1554 = vst.msk [vmem:[%s4 + $0xa4] sm:$0xf] %vm892, %v1428
  %1555 = vst.msk [vmem:[%s4 + $0xa8] sm:$0xf] %vm892, %v1429
  %1556 = vst.msk [vmem:[%s4 + $0xac] sm:$0xf] %vm892, %v1430
  %1557 = vst.msk [vmem:[%s4 + $0xb0] sm:$0xf] %vm892, %v1431
  %1558 = vst.msk [vmem:[%s4 + $0xb4] sm:$0xf] %vm892, %v1432
  %1559 = vst.msk [vmem:[%s4 + $0xb8] sm:$0xf] %vm892, %v1433
  %1560 = vst.msk [vmem:[%s4 + $0xbc] sm:$0xf] %vm892, %v1434
  %1561 = vst.msk [vmem:[%s4 + $0xc0] sm:$0xf] %vm892, %v1435
  %1562 = vst.msk [vmem:[%s4 + $0xc4] sm:$0xf] %vm892, %v1436
  %1563 = vst.msk [vmem:[%s4 + $0xc8] sm:$0xf] %vm892, %v1437
  %1564 = vst.msk [vmem:[%s4 + $0xcc] sm:$0xf] %vm892, %v1438
  %1565 = vst.msk [vmem:[%s4 + $0xd0] sm:$0xf] %vm892, %v1439
  %1566 = vst.msk [vmem:[%s4 + $0xd4] sm:$0xf] %vm892, %v1440
  %1567 = vst.msk [vmem:[%s4 + $0xd8] sm:$0xf] %vm892, %v1441
  %1568 = vst.msk [vmem:[%s4 + $0xdc] sm:$0xf] %vm892, %v1442
  %1569 = vst.msk [vmem:[%s4 + $0xe0] sm:$0xf] %vm892, %v1443
  %1570 = vst.msk [vmem:[%s4 + $0xe4] sm:$0xf] %vm892, %v1444
  %1571 = vst.msk [vmem:[%s4 + $0xe8] sm:$0xf] %vm892, %v1445
  %1572 = vst.msk [vmem:[%s4 + $0xec] sm:$0xf] %vm892, %v1446
  %1573 = vst.msk [vmem:[%s4 + $0xf0] sm:$0xf] %vm892, %v1447
  %1574 = vst.msk [vmem:[%s4 + $0xf4] sm:$0xf] %vm892, %v1448
  %1575 = vst.msk [vmem:[%s4 + $0xf8] sm:$0xf] %vm892, %v1449
  // Predicated region
  $region14: #{tpu_custom_call.1} parent=0 // pred_check
    _
  $region15: #{tpu_custom_call.1} parent=0 // pred_check_branch
    %1577 = sbr.rel (0) target = $region17
  $region16: #{tpu_custom_call.1} parent=0 // pred_region
    _
  $region17: #{tpu_custom_call.1} parent=0 // pred_fallthru
    _
  // Predicated region
  $region18: #{tpu_custom_call.1} parent=0 // pred_check
    _
  $region19: #{tpu_custom_call.1} parent=0 // pred_check_branch
    %1579 = sbr.rel (0) target = $region21
  $region20: #{tpu_custom_call.1} parent=0 // pred_region
    _
  $region21: #{tpu_custom_call.1} parent=0 // pred_fallthru
    _
  // Predicated region
  $region22: #{tpu_custom_call.1} parent=0 // pred_check
    _
  $region23: #{tpu_custom_call.1} parent=0 // pred_check_branch
    %1581 = sbr.rel (0) target = $region25
  $region24: #{tpu_custom_call.1} parent=0 // pred_region
    _
  $region25: #{tpu_custom_call.1} parent=0 // pred_fallthru
    _
  // Predicated region
  $region26: #{tpu_custom_call.1} parent=0 // pred_check
    _
  $region27: #{tpu_custom_call.1} parent=0 // pred_check_branch
    %1583 = sbr.rel (0) target = $region29
  $region28: #{tpu_custom_call.1} parent=0 // pred_region
    _
  $region29: #{tpu_custom_call.1} parent=0 // pred_fallthru
    _

</llo_original>
